<compile_context>
chip_gen: v5e
topology: v5e:2x2
jax: 0.10.0
libtpu: 0.0.40
codegen_flags: <defaults>
</compile_context>

<pallas_src>
import jax
import jax.numpy as jnp
from jax.experimental import pallas as pl
from jax.experimental.pallas import tpu as pltpu


def _make_affine_kernel(apply_relu):
    """Tiled GEMM + bias (+ optional fused relu), single output stream."""

    def kernel(x_ref, w_ref, b_ref, y_ref, acc_ref):
        @pl.when(pl.program_id(2) == 0)
        def _():
            acc_ref[...] = jnp.zeros_like(acc_ref)

        acc_ref[...] += jnp.dot(
            x_ref[...], w_ref[...], preferred_element_type=jnp.float32
        )

        @pl.when(pl.program_id(2) == pl.num_programs(2) - 1)
        def _():
            y = acc_ref[...] + b_ref[...]          # f32 bias add at finalize
            if apply_relu:                         # fused, free VPU filler
                y = jnp.maximum(y, 0.0)
            y_ref[...] = y.astype(y_ref.dtype)

    return kernel


def _pick_tile(dim, preferred, align):
    """Largest multiple of `align` <= preferred that divides dim (else full)."""
    t = max((min(preferred, dim) // align) * align, align)
    while t > align and dim % t != 0:
        t -= align
    if dim % t != 0:
        t = dim            # full extent is always a legal block shape
    return t


def linear_head(x, w, b, *, apply_relu, tm=256, tn=256, tk=512):
    """One head of F:  x @ w + b   (relu-applied when apply_relu=True)."""
    n, d_in = x.shape
    d_out = w.shape[1]
    out_dtype = x.dtype

    # bf16 operands feed the v6e/v7x MXU at full rate and halve DMA bytes;
    # accumulation (preferred_element_type) and bias add remain f32.
    x_bf = x.astype(jnp.bfloat16)
    w_bf = w.astype(jnp.bfloat16)
    b2d = b.reshape(1, d_out).astype(jnp.float32)

    tm = _pick_tile(n, tm, 8)
    tn = _pick_tile(d_out, tn, 128)
    tk = _pick_tile(d_in, tk, 128)
    grid = (n // tm, d_out // tn, d_in // tk)

    out_bytes = n * d_out * jnp.dtype(out_dtype).itemsize
    cost = pl.CostEstimate(
        flops=2 * n * d_in * d_out,
        transcendentals=0,
        bytes_accessed=x_bf.size * 2 + w_bf.size * 2 + b2d.size * 4 + out_bytes,
    )

    return pl.pallas_call(
        _make_affine_kernel(apply_relu),
        out_shape=jax.ShapeDtypeStruct((n, d_out), out_dtype),
        grid_spec=pltpu.PrefetchScalarGridSpec(
            num_scalar_prefetch=0,
            grid=grid,
            in_specs=[
                pl.BlockSpec((tm, tk), lambda i, j, k: (i, k)),
                pl.BlockSpec((tk, tn), lambda i, j, k: (k, j)),
                pl.BlockSpec((1, tn), lambda i, j, k: (0, j)),
            ],
            out_specs=pl.BlockSpec((tm, tn), lambda i, j, k: (i, j)),
            scratch_shapes=[pltpu.VMEM((tm, tn), jnp.float32)],
        ),
        compiler_params=pltpu.CompilerParams(
            dimension_semantics=("parallel", "parallel", "arbitrary"),
            vmem_limit_bytes=32 * 1024 * 1024,   # safe on v7x's 64 MiB VMEM
        ),
        cost_estimate=cost,
    )(x_bf, w_bf, b2d)


class _LazyPair:
    """Tuple-like output of F whose heads are computed only when indexed."""

    def __init__(self, thunks):
        self._thunks = tuple(thunks)

    def __len__(self):
        return len(self._thunks)

    def __getitem__(self, idx):
        return self._thunks[idx]()


class LinearTwoOut:
    """F(x) = (x @ W + b, relu(x @ W + b)), each head its own Pallas kernel."""

    def __init__(self, w, b):
        self.w = w
        self.b = b

    def __repr__(self):
        return f"LinearTwoOut({self.w.shape[0]}x{self.w.shape[1]})"

    def __call__(self, x):
        return _LazyPair((
            lambda: linear_head(x, self.w, self.b, apply_relu=False),
            lambda: linear_head(x, self.w, self.b, apply_relu=True),
        ))


class Select:
    """JAX equivalent of the PyTorch Select wrapper."""

    def __init__(self, F, out_idx=0):
        self.F = F
        self.out_idx = out_idx

    def __repr__(self):
        return "Select(" + repr(self.F) + f",{self.out_idx})"

    def __call__(self, *args, **kwargs):
        return self.F(*args, **kwargs)[self.out_idx]


if __name__ == "__main__":
    key = jax.random.PRNGKey(0)
    k_x, k_w, k_b = jax.random.split(key, 3)

    # Batched rows so the MXU is actually fed (N=8 would be pure launch
    # overhead); shapes divide the (tm, tn, tk) tiles -> grid (2, 2, 2).
    N, D_IN, D_OUT = 512, 1024, 512
    x = jax.random.normal(k_x, (N, D_IN), dtype=jnp.float32)
    W = jax.random.normal(k_w, (D_IN, D_OUT), dtype=jnp.float32) * 0.05
    b = jax.random.normal(k_b, (D_OUT,), dtype=jnp.float32) * 0.01

    F = LinearTwoOut(W, b)
    select0 = Select(F, out_idx=0)       # only the affine head is computed
    out0 = jax.block_until_ready(select0(x))

    select1 = Select(F, out_idx=1)       # relu head, fused in its own kernel
    out1 = jax.block_until_ready(select1(x))

    # Reference matching the kernel's bf16-input / f32-accumulate numerics.
    x_bf = x.astype(jnp.bfloat16).astype(jnp.float32)
    w_bf = W.astype(jnp.bfloat16).astype(jnp.float32)
    ref0 = x_bf @ w_bf + b[None, :]
    assert out0.shape == (N, D_OUT)
    assert jnp.allclose(out0, ref0, atol=1e-2, rtol=1e-2)
    assert jnp.allclose(out1, jnp.maximum(ref0, 0.0), atol=1e-2, rtol=1e-2)

    # Loose sanity check against the pure-f32 reference.
    ref_f32 = x @ W + b[None, :]
    assert jnp.allclose(out0, ref_f32, atol=5e-2, rtol=5e-2)

    print("KERNEL_OK")
</pallas_src>

<mosaic_0001>
module attributes {stable_mosaic.version = 11 : i64} {
  func.func @kernel(%arg0: i32, %arg1: i32, %arg2: i32, %arg3: memref<256x512xbf16, #tpu.memory_space<vmem>>, %arg4: memref<512x256xbf16, #tpu.memory_space<vmem>>, %arg5: memref<1x256xf32, #tpu.memory_space<vmem>>, %arg6: memref<256x256xf32, #tpu.memory_space<vmem>>, %arg7: memref<256x256xf32, #tpu.memory_space<vmem>>) attributes {dimension_semantics = [#tpu.dimension_semantics<parallel>, #tpu.dimension_semantics<parallel>, #tpu.dimension_semantics<arbitrary>], iteration_bounds = array<i64: 2, 2, 2>, scalar_prefetch = 0 : i64, scratch_operands = 1 : i64, tpu.core_type = #tpu.core_type<tc>, window_params = [{transform_indices = @transform_0, window_bounds = array<i64: 256, 512>}, {transform_indices = @transform_1, window_bounds = array<i64: 512, 256>}, {transform_indices = @transform_2, window_bounds = array<i64: 1, 256>}, {transform_indices = @transform_3, window_bounds = array<i64: 256, 256>}]} {
    %c0_i32 = arith.constant 0 : i32
    %0 = arith.cmpi eq, %arg2, %c0_i32 : i32
    %1 = arith.extui %0 : i1 to i32
    %c0_i32_0 = arith.constant 0 : i32
    %2 = arith.cmpi ne, %1, %c0_i32_0 : i32
    scf.if %2 {
      %cst_9 = arith.constant 0.000000e+00 : f32
      %12 = vector.broadcast %cst_9 : f32 to vector<256x256xf32>
      %c0_10 = arith.constant 0 : index
      %c0_11 = arith.constant 0 : index
      %13 = vector.load %arg7[%c0_10, %c0_11] : memref<256x256xf32, #tpu.memory_space<vmem>>, vector<256x256xf32>
      tpu.vector_store %arg7[%c0_10, %c0_11], %12 {strides = array<i32>} : memref<256x256xf32, #tpu.memory_space<vmem>>, vector<256x256xf32>,
    } else {
    }
    %c0 = arith.constant 0 : index
    %c0_1 = arith.constant 0 : index
    %3 = vector.load %arg7[%c0, %c0_1] : memref<256x256xf32, #tpu.memory_space<vmem>>, vector<256x256xf32>
    %c0_2 = arith.constant 0 : index
    %c0_3 = arith.constant 0 : index
    %4 = vector.load %arg3[%c0_2, %c0_3] : memref<256x512xbf16, #tpu.memory_space<vmem>>, vector<256x512xbf16>
    %c0_4 = arith.constant 0 : index
    %c0_5 = arith.constant 0 : index
    %5 = vector.load %arg4[%c0_4, %c0_5] : memref<512x256xbf16, #tpu.memory_space<vmem>>, vector<512x256xbf16>
    %cst = arith.constant dense<0.000000e+00> : vector<256x256xf32>
    %6 = tpu.matmul %4, %5, %cst {dimension_numbers = #tpu.dot_dimension_numbers<[1], [0], [0], [1], [0, 0, 1, 1], [], []>} : vector<256x512xbf16>, vector<512x256xbf16>, vector<256x256xf32> -> vector<256x256xf32>
    %7 = arith.addf %3, %6 : vector<256x256xf32>
    %c0_6 = arith.constant 0 : index
    %c0_7 = arith.constant 0 : index
    %8 = vector.load %arg7[%c0_6, %c0_7] : memref<256x256xf32, #tpu.memory_space<vmem>>, vector<256x256xf32>
    tpu.vector_store %arg7[%c0_6, %c0_7], %7 {strides = array<i32>} : memref<256x256xf32, #tpu.memory_space<vmem>>, vector<256x256xf32>,
    %c1_i32 = arith.constant 1 : i32
    %9 = arith.cmpi eq, %arg2, %c1_i32 : i32
    %10 = arith.extui %9 : i1 to i32
    %c0_i32_8 = arith.constant 0 : i32
    %11 = arith.cmpi ne, %10, %c0_i32_8 : i32
    scf.if %11 {
      %c0_9 = arith.constant 0 : index
      %c0_10 = arith.constant 0 : index
      %12 = vector.load %arg7[%c0_9, %c0_10] : memref<256x256xf32, #tpu.memory_space<vmem>>, vector<256x256xf32>
      %c0_11 = arith.constant 0 : index
      %c0_12 = arith.constant 0 : index
      %13 = vector.load %arg5[%c0_11, %c0_12] : memref<1x256xf32, #tpu.memory_space<vmem>>, vector<1x256xf32>
      %14 = vector.broadcast %13 : vector<1x256xf32> to vector<256x256xf32>
      %15 = arith.addf %12, %14 : vector<256x256xf32>
      %c0_13 = arith.constant 0 : index
      %c0_14 = arith.constant 0 : index
      %16 = vector.load %arg6[%c0_13, %c0_14] : memref<256x256xf32, #tpu.memory_space<vmem>>, vector<256x256xf32>
      tpu.vector_store %arg6[%c0_13, %c0_14], %15 {strides = array<i32>} : memref<256x256xf32, #tpu.memory_space<vmem>>, vector<256x256xf32>,
    } else {
    }
    return
  }
  func.func @transform_0(%arg0: i32, %arg1: i32, %arg2: i32) -> (i32, i32) {
    %c0_i32 = arith.constant 0 : i32
    return %arg0, %arg2 : i32, i32
  }
  func.func @transform_1(%arg0: i32, %arg1: i32, %arg2: i32) -> (i32, i32) {
    %c0_i32 = arith.constant 0 : i32
    return %arg2, %arg1 : i32, i32
  }
  func.func @transform_2(%arg0: i32, %arg1: i32, %arg2: i32) -> (i32, i32) {
    %c0_i32 = arith.constant 0 : i32
    %c0_i32_0 = arith.constant 0 : i32
    return %c0_i32, %arg1 : i32, i32
  }
  func.func @transform_3(%arg0: i32, %arg1: i32, %arg2: i32) -> (i32, i32) {
    %c0_i32 = arith.constant 0 : i32
    return %arg0, %arg1 : i32, i32
  }
}

</mosaic_0001>

<llo_original>
// kernel: tpu_custom_call.1
$region0: #{tpu_custom_call.1}
  #allocation0 [shape = 'u32[]', space=smem, size = 0x4, offset = 0x4, fixed_abs, tag = 'smem constant byte address 0x4 - core index']
  #allocation1 [shape = 'u32[72,128]{1,0:T(1,128)}', space=vmem, size = 0x9000, scoped, tag = 'internal scratch']
  #allocation2 [shape = 'f32[256,256]{1,0:T(8,128)}', space=vmem, size = 0x40000, scoped, tag = 'scratch operand']
  %s0 = inlined_call_operand.hbm [shape: bf16[512,1024], index: 0, kind: input, shape index: {}]
  %s1 = inlined_call_operand.hbm [shape: bf16[1024,512], index: 1, kind: input, shape index: {}]
  %s2 = inlined_call_operand.hbm [shape: f32[1,512], index: 2, kind: input, shape index: {}]
  %s3 = inlined_call_operand.hbm [shape: f32[512,512], index: 3, kind: output, shape index: {}]
  %s4 = sld [smem:[#allocation0]]
  $region65: #{tpu_custom_call.1} parent=0
    _
  %s6 = ssub.s32 1, %s4
  %s7 = scalar_select 0, %s6, %s4
  $region1: #{tpu_custom_call.1} parent=0
    #allocation3 [shape = 'u8[524288]{0}', space=vmem, size = 0x80000, scoped, tag = 'input window, operand 0']
    #allocation4 [shape = 's32[2]{0}', space=sflag, size = 0x8, scoped, tag = 'scoped memory for tpu_custom_call.1']
    #allocation5 [shape = 's32[2]{0}', space=sflag, size = 0x8, scoped, tag = 'scoped memory for tpu_custom_call.1']
    #allocation6 [shape = 'u8[524288]{0}', space=vmem, size = 0x80000, scoped, tag = 'input window, operand 1']
    #allocation7 [shape = 's32[2]{0}', space=sflag, size = 0x8, scoped, tag = 'scoped memory for tpu_custom_call.1']
    #allocation8 [shape = 'u8[2048]{0}', space=vmem, size = 0x800, scoped, tag = 'input window, operand 2']
    #allocation9 [shape = 'u8[524288]{0}', space=vmem, size = 0x80000, scoped, tag = 'output window, operand 0']
    %8 = vsyncpa [#allocation4], 0
    %s9 = scalar_lea.sflag [#allocation4], 1
    %10 = vsyncpa %s9, 0
    %11 = vsyncpa [#allocation7], 0
    %s12 = scalar_lea.sflag [#allocation7], 1
    %13 = vsyncpa %s12, 0
    %14 = vsyncpa [#allocation5], 0
    %s15 = scalar_lea.sflag [#allocation5], 1
    %16 = vsyncpa %s15, 0
    loop: start=0, step=1, limit=10
    $region2: #{tpu_custom_call.1} parent=1 // loop_pre_header
      _
    $region3: #{tpu_custom_call.1} parent=1 // loop_header
      %s18 = sphi 0, %s22
      %p19 = scmp.ge.s32.totalorder %s18, 10
      %s25 = sphi 0, %s44
      %s26 = sphi 0, %s40
      %s27 = sphi 0, %s36
      %s28 = sphi 0, %s25
      %s29 = sphi 0, %s26
      %s30 = sphi 0, %s27
      %s31 = sphi 0, %s28
      %s32 = sphi 0, %s29
      %s33 = sphi 0, %s30
      %s49 = sphi 0, %s51
      %s52 = sphi 0, %s49
      %s53 = sphi 0, %s52
      %s69 = sphi 0, %s53
      %s77 = sphi 0, %s79
      %s80 = sphi 0, %s77
      %s81 = sphi 0, %s80
      %s97 = sphi 0, %s81
      %s103 = sphi 0, %s105
      %s106 = sphi 0, %s103
      %s107 = sphi 0, %s106
      %s123 = sphi 0, %s107
      %s131 = sphi 0, %s133
      %s134 = sphi 0, %s131
      %s135 = sphi 0, %s134
      %s151 = sphi 0, %s135
    $region4: #{tpu_custom_call.1} parent=1 // loop_header_branch
      %21 = sbr.rel (%p19) target = $region8
    $region5: #{tpu_custom_call.1} parent=1 // loop_body
      %s23 = ssub.s32 %s18, 1
      %s24 = ssub.s32 %s18, 2
      %s34 = sadd.s32 1, %s27
      %p35 = scmp.ge.s32.totalorder %s34, 2
      %s36 = scalar_select %p35, 0, %s34
      %s37 = sadd.s32 1, %s26
      %s38 = scalar_select %p35, %s37, %s26
      %p39 = scmp.ge.s32.totalorder %s38, 2
      %s40 = scalar_select %p39, 0, %s38
      %s41 = sadd.s32 1, %s25
      %s42 = scalar_select %p39, %s41, %s25
      %p43 = scmp.ge.s32.totalorder %s42, 2
      %s44 = scalar_select %p43, 0, %s42
      %s45 = ssub.s32 %s25, %s44
      %s46 = ssub.s32 %s27, %s36
      %s47 = sor.u32 %s45, %s46
      %p48 = scmp.eq.s32.totalorder %s47, 0
      %s50 = sadd.s32 %s49, 1
      %s51 = scalar_select %p48, %s49, %s50
      %p54 = pneg %p48
      %p55 = scmp.eq.s32.totalorder %s18, 7
      %p56 = por %p54, %p55
      %p57 = scmp.ne.s32.totalorder %s49, %s52
      %p58 = scmp.eq.s32.totalorder %s18, 0
      %p59 = por %p57, %p58
      %p60 = scmp.ne.s32.totalorder %s49, %s52
      %p61 = scmp.eq.s32.totalorder %s23, 7
      %p62 = por %p60, %p61
      %p63 = scmp.ne.s32.totalorder %s52, %s53
      %p64 = scmp.eq.s32.totalorder %s23, 0
      %p65 = por %p63, %p64
      %p66 = scmp.ne.s32.totalorder %s52, %s53
      %p67 = scmp.eq.s32.totalorder %s24, 7
      %p68 = por %p66, %p67
      %p70 = scmp.ne.s32.totalorder %s53, %s69
      %p71 = scmp.eq.s32.totalorder %s24, 0
      %p72 = por %p70, %p71
      %s73 = ssub.s32 %s27, %s36
      %s74 = ssub.s32 %s26, %s40
      %s75 = sor.u32 %s73, %s74
      %p76 = scmp.eq.s32.totalorder %s75, 0
      %s78 = sadd.s32 %s77, 1
      %s79 = scalar_select %p76, %s77, %s78
      %p82 = pneg %p76
      %p83 = scmp.eq.s32.totalorder %s18, 7
      %p84 = por %p82, %p83
      %p85 = scmp.ne.s32.totalorder %s77, %s80
      %p86 = scmp.eq.s32.totalorder %s18, 0
      %p87 = por %p85, %p86
      %p88 = scmp.ne.s32.totalorder %s77, %s80
      %p89 = scmp.eq.s32.totalorder %s23, 7
      %p90 = por %p88, %p89
      %p91 = scmp.ne.s32.totalorder %s80, %s81
      %p92 = scmp.eq.s32.totalorder %s23, 0
      %p93 = por %p91, %p92
      %p94 = scmp.ne.s32.totalorder %s80, %s81
      %p95 = scmp.eq.s32.totalorder %s24, 7
      %p96 = por %p94, %p95
      %p98 = scmp.ne.s32.totalorder %s81, %s97
      %p99 = scmp.eq.s32.totalorder %s24, 0
      %p100 = por %p98, %p99
      %s101 = ssub.s32 %s26, %s40
      %p102 = scmp.eq.s32.totalorder %s101, 0
      %s104 = sadd.s32 %s103, 1
      %s105 = scalar_select %p102, %s103, %s104
      %p108 = pneg %p102
      %p109 = scmp.eq.s32.totalorder %s18, 7
      %p110 = por %p108, %p109
      %p111 = scmp.ne.s32.totalorder %s103, %s106
      %p112 = scmp.eq.s32.totalorder %s18, 0
      %p113 = por %p111, %p112
      %p114 = scmp.ne.s32.totalorder %s103, %s106
      %p115 = scmp.eq.s32.totalorder %s23, 7
      %p116 = por %p114, %p115
      %p117 = scmp.ne.s32.totalorder %s106, %s107
      %p118 = scmp.eq.s32.totalorder %s23, 0
      %p119 = por %p117, %p118
      %p120 = scmp.ne.s32.totalorder %s106, %s107
      %p121 = scmp.eq.s32.totalorder %s24, 7
      %p122 = por %p120, %p121
      %p124 = scmp.ne.s32.totalorder %s107, %s123
      %p125 = scmp.eq.s32.totalorder %s24, 0
      %p126 = por %p124, %p125
      %s127 = ssub.s32 %s25, %s44
      %s128 = ssub.s32 %s26, %s40
      %s129 = sor.u32 %s127, %s128
      %p130 = scmp.eq.s32.totalorder %s129, 0
      %s132 = sadd.s32 %s131, 1
      %s133 = scalar_select %p130, %s131, %s132
      %p136 = pneg %p130
      %p137 = scmp.eq.s32.totalorder %s18, 7
      %p138 = por %p136, %p137
      %p139 = scmp.ne.s32.totalorder %s131, %s134
      %p140 = scmp.eq.s32.totalorder %s18, 0
      %p141 = por %p139, %p140
      %p142 = scmp.ne.s32.totalorder %s131, %s134
      %p143 = scmp.eq.s32.totalorder %s23, 7
      %p144 = por %p142, %p143
      %p145 = scmp.ne.s32.totalorder %s134, %s135
      %p146 = scmp.eq.s32.totalorder %s23, 0
      %p147 = por %p145, %p146
      %p148 = scmp.ne.s32.totalorder %s134, %s135
      %p149 = scmp.eq.s32.totalorder %s24, 7
      %p150 = por %p148, %p149
      %p152 = scmp.ne.s32.totalorder %s135, %s151
      %p153 = scmp.eq.s32.totalorder %s24, 0
      %p154 = por %p152, %p153
      %p155 = scmp.le.s32.totalorder 1, %s18
      %p156 = scmp.lt.s32.totalorder %s18, 9
      %p157 = pnand %p155, %p156
      %p158 = pneg %p157
      // Predicated region
      $region9: #{tpu_custom_call.1} parent=5 // pred_check
        _
      $region10: #{tpu_custom_call.1} parent=5 // pred_check_branch
        %160 = sbr.rel (%p157) target = $region12
      $region11: #{tpu_custom_call.1} parent=5 // pred_region
        %s161 = ssub.s32 %s18, 1
      $region12: #{tpu_custom_call.1} parent=5 // pred_fallthru
        _
      %p162 = scmp.lt.s32.totalorder %s18, 8
      // Predicated region
      $region13: #{tpu_custom_call.1} parent=5 // pred_check
        %p163 = pneg %p162
      $region14: #{tpu_custom_call.1} parent=5 // pred_check_branch
        %165 = sbr.rel (%p163) target = $region16
      $region15: #{tpu_custom_call.1} parent=5 // pred_region
        // Predicated region
        $region17: #{tpu_custom_call.1} parent=15 // pred_check
          %p166 = pneg %p59
        $region18: #{tpu_custom_call.1} parent=15 // pred_check_branch
          %168 = sbr.rel (%p166) target = $region20
        $region19: #{tpu_custom_call.1} parent=15 // pred_region
          %s169 = sand.u32 %s49, 1
          %s170 = scalar_lea.sflag [#allocation4], %s169
          %s171 = sand.u32 %s49, 1
          %s172 = smul.addr %s171, 512
          %s173 = scalar_lea.vmem [#allocation3], %s172
          %s174 = smul.u32 32, %s25
          %s175 = smul.u32 4, %s27
          %177 = vsyncadd %s170, 0
          %s178 = smul.addr %s174, 8
          %s179 = sadd.s32 %s175, %s178
          %s180 = smul.addr %s179, 4
          %s181 = scalar_lea.hbm %s0, %s180
          %s182 = sshll.u32 %s181, 4
          %s183 = int_to_ptr.hbm [resolvable:$true] %s182
          %s184 = sshll.u32 %s173, 4
          %s185 = int_to_ptr.vmem [resolvable:$true] %s184
          %190 = dma.hbm_to_vmem [thread:$0]  %s183, 8192, %s185, %s170, 512, 256, 16
        $region20: #{tpu_custom_call.1} parent=15 // pred_fallthru
          _
        // Predicated region
        $region21: #{tpu_custom_call.1} parent=15 // pred_check
          %p191 = pneg %p87
        $region22: #{tpu_custom_call.1} parent=15 // pred_check_branch
          %193 = sbr.rel (%p191) target = $region24
        $region23: #{tpu_custom_call.1} parent=15 // pred_region
          %s194 = sand.u32 %s18, 1
          %s195 = scalar_lea.sflag [#allocation7], %s194
          %s196 = sand.u32 %s77, 1
          %s197 = smul.addr %s196, 512
          %s198 = scalar_lea.vmem [#allocation6], %s197
          %s199 = smul.u32 64, %s27
          %s200 = smul.u32 2, %s26
          %202 = vsyncadd %s195, 0
          %s203 = smul.addr %s199, 4
          %s204 = sadd.s32 %s200, %s203
          %s205 = smul.addr %s204, 4
          %s206 = scalar_lea.hbm %s1, %s205
          %s207 = sshll.u32 %s206, 4
          %s208 = int_to_ptr.hbm [resolvable:$true] %s207
          %s209 = sshll.u32 %s198, 4
          %s210 = int_to_ptr.vmem [resolvable:$true] %s209
          %215 = dma.hbm_to_vmem [thread:$0]  %s208, 8192, %s210, %s195, 256, 128, 8
        $region24: #{tpu_custom_call.1} parent=15 // pred_fallthru
          _
        // Predicated region
        $region25: #{tpu_custom_call.1} parent=15 // pred_check
          %p216 = pneg %p113
        $region26: #{tpu_custom_call.1} parent=15 // pred_check_branch
          %218 = sbr.rel (%p216) target = $region28
        $region27: #{tpu_custom_call.1} parent=15 // pred_region
          %s219 = sand.u32 %s18, 1
          %s220 = scalar_lea.sflag [#allocation7], %s219
          %s221 = sand.u32 %s103, 1
          %s222 = smul.addr %s221, 2
          %s223 = scalar_lea.vmem [#allocation8], %s222
          %s224 = smul.u32 2, %s26
          %226 = vsyncadd %s220, 0
          %s227 = scalar_lea.hbm %s2, %s224
          %s229 = sshll.u32 %s227, 4
          %s230 = int_to_ptr.hbm [resolvable:$true] %s229
          %s231 = sshll.u32 %s223, 4
          %s232 = int_to_ptr.vmem [resolvable:$true] %s231
          %234 = dma.hbm_to_vmem [thread:$0]  %s230, 32, %s232, %s220
        $region28: #{tpu_custom_call.1} parent=15 // pred_fallthru
          _
      $region16: #{tpu_custom_call.1} parent=5 // pred_fallthru
        _
      %p235 = scmp.le.s32.totalorder 1, %s18
      %p236 = scmp.lt.s32.totalorder %s18, 9
      %p237 = pnand %p235, %p236
      %p238 = pneg %p237
      // Predicated region
      $region29: #{tpu_custom_call.1} parent=5 // pred_check
        _
      $region30: #{tpu_custom_call.1} parent=5 // pred_check_branch
        %240 = sbr.rel (%p237) target = $region32
      $region31: #{tpu_custom_call.1} parent=5 // pred_region
        %s241 = ssub.s32 %s18, 1
        %s242 = sand.u32 %s52, 1
        %s243 = scalar_lea.sflag [#allocation4], %s242
        %s244 = sand.u32 %s52, 1
        %s245 = smul.addr %s244, 512
        %s246 = scalar_lea.vmem [#allocation3], %s245
        // Predicated region
        $region33: #{tpu_custom_call.1} parent=31 // pred_check
          %p247 = pneg %p65
        $region34: #{tpu_custom_call.1} parent=31 // pred_check_branch
          %249 = sbr.rel (%p247) target = $region36
        $region35: #{tpu_custom_call.1} parent=31 // pred_region
          %251 = dma.done %s243, 8192
        $region36: #{tpu_custom_call.1} parent=31 // pred_fallthru
          _
        %s252 = sand.u32 %s23, 1
        %s253 = scalar_lea.sflag [#allocation7], %s252
        %s254 = sand.u32 %s80, 1
        %s255 = smul.addr %s254, 512
        %s256 = scalar_lea.vmem [#allocation6], %s255
        // Predicated region
        $region37: #{tpu_custom_call.1} parent=31 // pred_check
          %p257 = pneg %p93
        $region38: #{tpu_custom_call.1} parent=31 // pred_check_branch
          %259 = sbr.rel (%p257) target = $region40
        $region39: #{tpu_custom_call.1} parent=31 // pred_region
          %261 = dma.done %s253, 8192
        $region40: #{tpu_custom_call.1} parent=31 // pred_fallthru
          _
        %s262 = sand.u32 %s23, 1
        %s263 = scalar_lea.sflag [#allocation7], %s262
        %s264 = sand.u32 %s106, 1
        %s265 = smul.addr %s264, 2
        %s266 = scalar_lea.vmem [#allocation8], %s265
        // Predicated region
        $region41: #{tpu_custom_call.1} parent=31 // pred_check
          %p267 = pneg %p119
        $region42: #{tpu_custom_call.1} parent=31 // pred_check_branch
          %269 = sbr.rel (%p267) target = $region44
        $region43: #{tpu_custom_call.1} parent=31 // pred_region
          %271 = dma.done %s263, 32
        $region44: #{tpu_custom_call.1} parent=31 // pred_fallthru
          _
        %s272 = sand.u32 %s52, 1
        %s273 = scalar_lea.sflag [#allocation4], %s272
        %s274 = sand.u32 %s52, 1
        %s275 = smul.addr %s274, 512
        %s276 = scalar_lea.vmem [#allocation3], %s275
        %p277 = pneg %p65
        %p278 = pneg %p62
        %s279 = sand.u32 %s23, 1
        %s280 = scalar_lea.sflag [#allocation7], %s279
        %s281 = sand.u32 %s80, 1
        %s282 = smul.addr %s281, 512
        %s283 = scalar_lea.vmem [#allocation6], %s282
        %p284 = pneg %p93
        %p285 = pneg %p90
        %s286 = sand.u32 %s23, 1
        %s287 = scalar_lea.sflag [#allocation7], %s286
        %s288 = sand.u32 %s106, 1
        %s289 = smul.addr %s288, 2
        %s290 = scalar_lea.vmem [#allocation8], %s289
        %p291 = pneg %p119
        %p292 = pneg %p116
        %p293 = pneg %p147
        %p294 = pneg %p144
        %s295 = sand.u32 %s134, 1
        %s296 = scalar_lea.sflag [#allocation5], %s295
        %s297 = sand.u32 %s134, 1
        %s298 = smul.addr %s297, 512
        %s299 = scalar_lea.vmem [#allocation9], %s298
        %s300 = smul.u32 32, %s28
        %s301 = smul.u32 4, %s30
        %s302 = smul.u32 64, %s30
        %s303 = smul.u32 2, %s29
        %s304 = smul.u32 2, %s29
        %s305 = smul.u32 32, %s28
        %s306 = smul.u32 2, %s29
        %p307 = scmp.eq.s32.totalorder %s30, 0
        // Predicated region
        $region45: #{tpu_custom_call.1} parent=31 // pred_check
          %p308 = pneg %p307
        $region46: #{tpu_custom_call.1} parent=31 // pred_check_branch
          %310 = sbr.rel (%p308) target = $region48
        $region47: #{tpu_custom_call.1} parent=31 // pred_region
          %311 = vst [vmem:[#allocation2] sm:$0xff] 0.0
          %312 = vst [vmem:[#allocation2 + $0x8] sm:$0xff] 0.0
          %313 = vst [vmem:[#allocation2 + $0x10] sm:$0xff] 0.0
          %314 = vst [vmem:[#allocation2 + $0x18] sm:$0xff] 0.0
          %315 = vst [vmem:[#allocation2 + $0x20] sm:$0xff] 0.0
          %316 = vst [vmem:[#allocation2 + $0x28] sm:$0xff] 0.0
          %317 = vst [vmem:[#allocation2 + $0x30] sm:$0xff] 0.0
          %318 = vst [vmem:[#allocation2 + $0x38] sm:$0xff] 0.0
          %319 = vst [vmem:[#allocation2 + $0x40] sm:$0xff] 0.0
          %320 = vst [vmem:[#allocation2 + $0x48] sm:$0xff] 0.0
          %321 = vst [vmem:[#allocation2 + $0x50] sm:$0xff] 0.0
          %322 = vst [vmem:[#allocation2 + $0x58] sm:$0xff] 0.0
          %323 = vst [vmem:[#allocation2 + $0x60] sm:$0xff] 0.0
          %324 = vst [vmem:[#allocation2 + $0x68] sm:$0xff] 0.0
          %325 = vst [vmem:[#allocation2 + $0x70] sm:$0xff] 0.0
          %326 = vst [vmem:[#allocation2 + $0x78] sm:$0xff] 0.0
          %327 = vst [vmem:[#allocation2 + $0x80] sm:$0xff] 0.0
          %328 = vst [vmem:[#allocation2 + $0x88] sm:$0xff] 0.0
          %329 = vst [vmem:[#allocation2 + $0x90] sm:$0xff] 0.0
          %330 = vst [vmem:[#allocation2 + $0x98] sm:$0xff] 0.0
          %331 = vst [vmem:[#allocation2 + $0xa0] sm:$0xff] 0.0
          %332 = vst [vmem:[#allocation2 + $0xa8] sm:$0xff] 0.0
          %333 = vst [vmem:[#allocation2 + $0xb0] sm:$0xff] 0.0
          %334 = vst [vmem:[#allocation2 + $0xb8] sm:$0xff] 0.0
          %335 = vst [vmem:[#allocation2 + $0xc0] sm:$0xff] 0.0
          %336 = vst [vmem:[#allocation2 + $0xc8] sm:$0xff] 0.0
          %337 = vst [vmem:[#allocation2 + $0xd0] sm:$0xff] 0.0
          %338 = vst [vmem:[#allocation2 + $0xd8] sm:$0xff] 0.0
          %339 = vst [vmem:[#allocation2 + $0xe0] sm:$0xff] 0.0
          %340 = vst [vmem:[#allocation2 + $0xe8] sm:$0xff] 0.0
          %341 = vst [vmem:[#allocation2 + $0xf0] sm:$0xff] 0.0
          %342 = vst [vmem:[#allocation2 + $0xf8] sm:$0xff] 0.0
          %343 = vst [vmem:[#allocation2 + $0x100] sm:$0xff] 0.0
          %344 = vst [vmem:[#allocation2 + $0x108] sm:$0xff] 0.0
          %345 = vst [vmem:[#allocation2 + $0x110] sm:$0xff] 0.0
          %346 = vst [vmem:[#allocation2 + $0x118] sm:$0xff] 0.0
          %347 = vst [vmem:[#allocation2 + $0x120] sm:$0xff] 0.0
          %348 = vst [vmem:[#allocation2 + $0x128] sm:$0xff] 0.0
          %349 = vst [vmem:[#allocation2 + $0x130] sm:$0xff] 0.0
          %350 = vst [vmem:[#allocation2 + $0x138] sm:$0xff] 0.0
          %351 = vst [vmem:[#allocation2 + $0x140] sm:$0xff] 0.0
          %352 = vst [vmem:[#allocation2 + $0x148] sm:$0xff] 0.0
          %353 = vst [vmem:[#allocation2 + $0x150] sm:$0xff] 0.0
          %354 = vst [vmem:[#allocation2 + $0x158] sm:$0xff] 0.0
          %355 = vst [vmem:[#allocation2 + $0x160] sm:$0xff] 0.0
          %356 = vst [vmem:[#allocation2 + $0x168] sm:$0xff] 0.0
          %357 = vst [vmem:[#allocation2 + $0x170] sm:$0xff] 0.0
          %358 = vst [vmem:[#allocation2 + $0x178] sm:$0xff] 0.0
          %359 = vst [vmem:[#allocation2 + $0x180] sm:$0xff] 0.0
          %360 = vst [vmem:[#allocation2 + $0x188] sm:$0xff] 0.0
          %361 = vst [vmem:[#allocation2 + $0x190] sm:$0xff] 0.0
          %362 = vst [vmem:[#allocation2 + $0x198] sm:$0xff] 0.0
          %363 = vst [vmem:[#allocation2 + $0x1a0] sm:$0xff] 0.0
          %364 = vst [vmem:[#allocation2 + $0x1a8] sm:$0xff] 0.0
          %365 = vst [vmem:[#allocation2 + $0x1b0] sm:$0xff] 0.0
          %366 = vst [vmem:[#allocation2 + $0x1b8] sm:$0xff] 0.0
          %367 = vst [vmem:[#allocation2 + $0x1c0] sm:$0xff] 0.0
          %368 = vst [vmem:[#allocation2 + $0x1c8] sm:$0xff] 0.0
          %369 = vst [vmem:[#allocation2 + $0x1d0] sm:$0xff] 0.0
          %370 = vst [vmem:[#allocation2 + $0x1d8] sm:$0xff] 0.0
          %371 = vst [vmem:[#allocation2 + $0x1e0] sm:$0xff] 0.0
          %372 = vst [vmem:[#allocation2 + $0x1e8] sm:$0xff] 0.0
          %373 = vst [vmem:[#allocation2 + $0x1f0] sm:$0xff] 0.0
          %374 = vst [vmem:[#allocation2 + $0x1f8] sm:$0xff] 0.0
        $region48: #{tpu_custom_call.1} parent=31 // pred_fallthru
          _
        %v375 = vld [vmem:[#allocation2] sm:$0xff]
        %v376 = vld [vmem:[#allocation2 + $0x8] sm:$0xff]
        %v377 = vld [vmem:[#allocation2 + $0x10] sm:$0xff]
        %v378 = vld [vmem:[#allocation2 + $0x18] sm:$0xff]
        %v379 = vld [vmem:[#allocation2 + $0x20] sm:$0xff]
        %v380 = vld [vmem:[#allocation2 + $0x28] sm:$0xff]
        %v381 = vld [vmem:[#allocation2 + $0x30] sm:$0xff]
        %v382 = vld [vmem:[#allocation2 + $0x38] sm:$0xff]
        %v383 = vld [vmem:[#allocation2 + $0x40] sm:$0xff]
        %v384 = vld [vmem:[#allocation2 + $0x48] sm:$0xff]
        %v385 = vld [vmem:[#allocation2 + $0x50] sm:$0xff]
        %v386 = vld [vmem:[#allocation2 + $0x58] sm:$0xff]
        %v387 = vld [vmem:[#allocation2 + $0x60] sm:$0xff]
        %v388 = vld [vmem:[#allocation2 + $0x68] sm:$0xff]
        %v389 = vld [vmem:[#allocation2 + $0x70] sm:$0xff]
        %v390 = vld [vmem:[#allocation2 + $0x78] sm:$0xff]
        %v391 = vld [vmem:[#allocation2 + $0x80] sm:$0xff]
        %v392 = vld [vmem:[#allocation2 + $0x88] sm:$0xff]
        %v393 = vld [vmem:[#allocation2 + $0x90] sm:$0xff]
        %v394 = vld [vmem:[#allocation2 + $0x98] sm:$0xff]
        %v395 = vld [vmem:[#allocation2 + $0xa0] sm:$0xff]
        %v396 = vld [vmem:[#allocation2 + $0xa8] sm:$0xff]
        %v397 = vld [vmem:[#allocation2 + $0xb0] sm:$0xff]
        %v398 = vld [vmem:[#allocation2 + $0xb8] sm:$0xff]
        %v399 = vld [vmem:[#allocation2 + $0xc0] sm:$0xff]
        %v400 = vld [vmem:[#allocation2 + $0xc8] sm:$0xff]
        %v401 = vld [vmem:[#allocation2 + $0xd0] sm:$0xff]
        %v402 = vld [vmem:[#allocation2 + $0xd8] sm:$0xff]
        %v403 = vld [vmem:[#allocation2 + $0xe0] sm:$0xff]
        %v404 = vld [vmem:[#allocation2 + $0xe8] sm:$0xff]
        %v405 = vld [vmem:[#allocation2 + $0xf0] sm:$0xff]
        %v406 = vld [vmem:[#allocation2 + $0xf8] sm:$0xff]
        %v407 = vld [vmem:[#allocation2 + $0x100] sm:$0xff]
        %v408 = vld [vmem:[#allocation2 + $0x108] sm:$0xff]
        %v409 = vld [vmem:[#allocation2 + $0x110] sm:$0xff]
        %v410 = vld [vmem:[#allocation2 + $0x118] sm:$0xff]
        %v411 = vld [vmem:[#allocation2 + $0x120] sm:$0xff]
        %v412 = vld [vmem:[#allocation2 + $0x128] sm:$0xff]
        %v413 = vld [vmem:[#allocation2 + $0x130] sm:$0xff]
        %v414 = vld [vmem:[#allocation2 + $0x138] sm:$0xff]
        %v415 = vld [vmem:[#allocation2 + $0x140] sm:$0xff]
        %v416 = vld [vmem:[#allocation2 + $0x148] sm:$0xff]
        %v417 = vld [vmem:[#allocation2 + $0x150] sm:$0xff]
        %v418 = vld [vmem:[#allocation2 + $0x158] sm:$0xff]
        %v419 = vld [vmem:[#allocation2 + $0x160] sm:$0xff]
        %v420 = vld [vmem:[#allocation2 + $0x168] sm:$0xff]
        %v421 = vld [vmem:[#allocation2 + $0x170] sm:$0xff]
        %v422 = vld [vmem:[#allocation2 + $0x178] sm:$0xff]
        %v423 = vld [vmem:[#allocation2 + $0x180] sm:$0xff]
        %v424 = vld [vmem:[#allocation2 + $0x188] sm:$0xff]
        %v425 = vld [vmem:[#allocation2 + $0x190] sm:$0xff]
        %v426 = vld [vmem:[#allocation2 + $0x198] sm:$0xff]
        %v427 = vld [vmem:[#allocation2 + $0x1a0] sm:$0xff]
        %v428 = vld [vmem:[#allocation2 + $0x1a8] sm:$0xff]
        %v429 = vld [vmem:[#allocation2 + $0x1b0] sm:$0xff]
        %v430 = vld [vmem:[#allocation2 + $0x1b8] sm:$0xff]
        %v431 = vld [vmem:[#allocation2 + $0x1c0] sm:$0xff]
        %v432 = vld [vmem:[#allocation2 + $0x1c8] sm:$0xff]
        %v433 = vld [vmem:[#allocation2 + $0x1d0] sm:$0xff]
        %v434 = vld [vmem:[#allocation2 + $0x1d8] sm:$0xff]
        %v435 = vld [vmem:[#allocation2 + $0x1e0] sm:$0xff]
        %v436 = vld [vmem:[#allocation2 + $0x1e8] sm:$0xff]
        %v437 = vld [vmem:[#allocation2 + $0x1f0] sm:$0xff]
        %v438 = vld [vmem:[#allocation2 + $0x1f8] sm:$0xff]
        %v439 = vld [vmem:[%s246] sm:$0xff]
        %v440 = vld [vmem:[%s246 + $0x8] sm:$0xff]
        %v441 = vld [vmem:[%s246 + $0x10] sm:$0xff]
        %v442 = vld [vmem:[%s246 + $0x18] sm:$0xff]
        %v443 = vld [vmem:[%s246 + $0x20] sm:$0xff]
        %v444 = vld [vmem:[%s246 + $0x28] sm:$0xff]
        %v445 = vld [vmem:[%s246 + $0x30] sm:$0xff]
        %v446 = vld [vmem:[%s246 + $0x38] sm:$0xff]
        %v447 = vld [vmem:[%s246 + $0x40] sm:$0xff]
        %v448 = vld [vmem:[%s246 + $0x48] sm:$0xff]
        %v449 = vld [vmem:[%s246 + $0x50] sm:$0xff]
        %v450 = vld [vmem:[%s246 + $0x58] sm:$0xff]
        %v451 = vld [vmem:[%s246 + $0x60] sm:$0xff]
        %v452 = vld [vmem:[%s246 + $0x68] sm:$0xff]
        %v453 = vld [vmem:[%s246 + $0x70] sm:$0xff]
        %v454 = vld [vmem:[%s246 + $0x78] sm:$0xff]
        %v455 = vld [vmem:[%s246 + $0x80] sm:$0xff]
        %v456 = vld [vmem:[%s246 + $0x88] sm:$0xff]
        %v457 = vld [vmem:[%s246 + $0x90] sm:$0xff]
        %v458 = vld [vmem:[%s246 + $0x98] sm:$0xff]
        %v459 = vld [vmem:[%s246 + $0xa0] sm:$0xff]
        %v460 = vld [vmem:[%s246 + $0xa8] sm:$0xff]
        %v461 = vld [vmem:[%s246 + $0xb0] sm:$0xff]
        %v462 = vld [vmem:[%s246 + $0xb8] sm:$0xff]
        %v463 = vld [vmem:[%s246 + $0xc0] sm:$0xff]
        %v464 = vld [vmem:[%s246 + $0xc8] sm:$0xff]
        %v465 = vld [vmem:[%s246 + $0xd0] sm:$0xff]
        %v466 = vld [vmem:[%s246 + $0xd8] sm:$0xff]
        %v467 = vld [vmem:[%s246 + $0xe0] sm:$0xff]
        %v468 = vld [vmem:[%s246 + $0xe8] sm:$0xff]
        %v469 = vld [vmem:[%s246 + $0xf0] sm:$0xff]
        %v470 = vld [vmem:[%s246 + $0xf8] sm:$0xff]
        %v471 = vld [vmem:[%s246 + $0x100] sm:$0xff]
        %v472 = vld [vmem:[%s246 + $0x108] sm:$0xff]
        %v473 = vld [vmem:[%s246 + $0x110] sm:$0xff]
        %v474 = vld [vmem:[%s246 + $0x118] sm:$0xff]
        %v475 = vld [vmem:[%s246 + $0x120] sm:$0xff]
        %v476 = vld [vmem:[%s246 + $0x128] sm:$0xff]
        %v477 = vld [vmem:[%s246 + $0x130] sm:$0xff]
        %v478 = vld [vmem:[%s246 + $0x138] sm:$0xff]
        %v479 = vld [vmem:[%s246 + $0x140] sm:$0xff]
        %v480 = vld [vmem:[%s246 + $0x148] sm:$0xff]
        %v481 = vld [vmem:[%s246 + $0x150] sm:$0xff]
        %v482 = vld [vmem:[%s246 + $0x158] sm:$0xff]
        %v483 = vld [vmem:[%s246 + $0x160] sm:$0xff]
        %v484 = vld [vmem:[%s246 + $0x168] sm:$0xff]
        %v485 = vld [vmem:[%s246 + $0x170] sm:$0xff]
        %v486 = vld [vmem:[%s246 + $0x178] sm:$0xff]
        %v487 = vld [vmem:[%s246 + $0x180] sm:$0xff]
        %v488 = vld [vmem:[%s246 + $0x188] sm:$0xff]
        %v489 = vld [vmem:[%s246 + $0x190] sm:$0xff]
        %v490 = vld [vmem:[%s246 + $0x198] sm:$0xff]
        %v491 = vld [vmem:[%s246 + $0x1a0] sm:$0xff]
        %v492 = vld [vmem:[%s246 + $0x1a8] sm:$0xff]
        %v493 = vld [vmem:[%s246 + $0x1b0] sm:$0xff]
        %v494 = vld [vmem:[%s246 + $0x1b8] sm:$0xff]
        %v495 = vld [vmem:[%s246 + $0x1c0] sm:$0xff]
        %v496 = vld [vmem:[%s246 + $0x1c8] sm:$0xff]
        %v497 = vld [vmem:[%s246 + $0x1d0] sm:$0xff]
        %v498 = vld [vmem:[%s246 + $0x1d8] sm:$0xff]
        %v499 = vld [vmem:[%s246 + $0x1e0] sm:$0xff]
        %v500 = vld [vmem:[%s246 + $0x1e8] sm:$0xff]
        %v501 = vld [vmem:[%s246 + $0x1f0] sm:$0xff]
        %v502 = vld [vmem:[%s246 + $0x1f8] sm:$0xff]
        %v503 = vld [vmem:[%s256] sm:$0xff]
        %v504 = vld [vmem:[%s256 + $0x8] sm:$0xff]
        %v505 = vld [vmem:[%s256 + $0x10] sm:$0xff]
        %v506 = vld [vmem:[%s256 + $0x18] sm:$0xff]
        %v507 = vld [vmem:[%s256 + $0x20] sm:$0xff]
        %v508 = vld [vmem:[%s256 + $0x28] sm:$0xff]
        %v509 = vld [vmem:[%s256 + $0x30] sm:$0xff]
        %v510 = vld [vmem:[%s256 + $0x38] sm:$0xff]
        %v511 = vld [vmem:[%s256 + $0x40] sm:$0xff]
        %v512 = vld [vmem:[%s256 + $0x48] sm:$0xff]
        %v513 = vld [vmem:[%s256 + $0x50] sm:$0xff]
        %v514 = vld [vmem:[%s256 + $0x58] sm:$0xff]
        %v515 = vld [vmem:[%s256 + $0x60] sm:$0xff]
        %v516 = vld [vmem:[%s256 + $0x68] sm:$0xff]
        %v517 = vld [vmem:[%s256 + $0x70] sm:$0xff]
        %v518 = vld [vmem:[%s256 + $0x78] sm:$0xff]
        %v519 = vld [vmem:[%s256 + $0x80] sm:$0xff]
        %v520 = vld [vmem:[%s256 + $0x88] sm:$0xff]
        %v521 = vld [vmem:[%s256 + $0x90] sm:$0xff]
        %v522 = vld [vmem:[%s256 + $0x98] sm:$0xff]
        %v523 = vld [vmem:[%s256 + $0xa0] sm:$0xff]
        %v524 = vld [vmem:[%s256 + $0xa8] sm:$0xff]
        %v525 = vld [vmem:[%s256 + $0xb0] sm:$0xff]
        %v526 = vld [vmem:[%s256 + $0xb8] sm:$0xff]
        %v527 = vld [vmem:[%s256 + $0xc0] sm:$0xff]
        %v528 = vld [vmem:[%s256 + $0xc8] sm:$0xff]
        %v529 = vld [vmem:[%s256 + $0xd0] sm:$0xff]
        %v530 = vld [vmem:[%s256 + $0xd8] sm:$0xff]
        %v531 = vld [vmem:[%s256 + $0xe0] sm:$0xff]
        %v532 = vld [vmem:[%s256 + $0xe8] sm:$0xff]
        %v533 = vld [vmem:[%s256 + $0xf0] sm:$0xff]
        %v534 = vld [vmem:[%s256 + $0xf8] sm:$0xff]
        %v535 = vld [vmem:[%s256 + $0x100] sm:$0xff]
        %v536 = vld [vmem:[%s256 + $0x108] sm:$0xff]
        %v537 = vld [vmem:[%s256 + $0x110] sm:$0xff]
        %v538 = vld [vmem:[%s256 + $0x118] sm:$0xff]
        %v539 = vld [vmem:[%s256 + $0x120] sm:$0xff]
        %v540 = vld [vmem:[%s256 + $0x128] sm:$0xff]
        %v541 = vld [vmem:[%s256 + $0x130] sm:$0xff]
        %v542 = vld [vmem:[%s256 + $0x138] sm:$0xff]
        %v543 = vld [vmem:[%s256 + $0x140] sm:$0xff]
        %v544 = vld [vmem:[%s256 + $0x148] sm:$0xff]
        %v545 = vld [vmem:[%s256 + $0x150] sm:$0xff]
        %v546 = vld [vmem:[%s256 + $0x158] sm:$0xff]
        %v547 = vld [vmem:[%s256 + $0x160] sm:$0xff]
        %v548 = vld [vmem:[%s256 + $0x168] sm:$0xff]
        %v549 = vld [vmem:[%s256 + $0x170] sm:$0xff]
        %v550 = vld [vmem:[%s256 + $0x178] sm:$0xff]
        %v551 = vld [vmem:[%s256 + $0x180] sm:$0xff]
        %v552 = vld [vmem:[%s256 + $0x188] sm:$0xff]
        %v553 = vld [vmem:[%s256 + $0x190] sm:$0xff]
        %v554 = vld [vmem:[%s256 + $0x198] sm:$0xff]
        %v555 = vld [vmem:[%s256 + $0x1a0] sm:$0xff]
        %v556 = vld [vmem:[%s256 + $0x1a8] sm:$0xff]
        %v557 = vld [vmem:[%s256 + $0x1b0] sm:$0xff]
        %v558 = vld [vmem:[%s256 + $0x1b8] sm:$0xff]
        %v559 = vld [vmem:[%s256 + $0x1c0] sm:$0xff]
        %v560 = vld [vmem:[%s256 + $0x1c8] sm:$0xff]
        %v561 = vld [vmem:[%s256 + $0x1d0] sm:$0xff]
        %v562 = vld [vmem:[%s256 + $0x1d8] sm:$0xff]
        %v563 = vld [vmem:[%s256 + $0x1e0] sm:$0xff]
        %v564 = vld [vmem:[%s256 + $0x1e8] sm:$0xff]
        %v565 = vld [vmem:[%s256 + $0x1f0] sm:$0xff]
        %v566 = vld [vmem:[%s256 + $0x1f8] sm:$0xff]
        %v631 = vunpack.c.l.b16 %v439
        %v632 = vunpack.c.h.b16 %v439
        %v633 = vunpack.c.l.b16 %v440
        %v634 = vunpack.c.h.b16 %v440
        %v635 = vunpack.c.l.b16 %v441
        %v636 = vunpack.c.h.b16 %v441
        %v637 = vunpack.c.l.b16 %v442
        %v638 = vunpack.c.h.b16 %v442
        %v639 = vunpack.c.l.b16 %v443
        %v640 = vunpack.c.h.b16 %v443
        %v641 = vunpack.c.l.b16 %v444
        %v642 = vunpack.c.h.b16 %v444
        %v643 = vunpack.c.l.b16 %v445
        %v644 = vunpack.c.h.b16 %v445
        %v645 = vunpack.c.l.b16 %v446
        %v646 = vunpack.c.h.b16 %v446
        %v647 = vunpack.c.l.b16 %v447
        %v648 = vunpack.c.h.b16 %v447
        %v649 = vunpack.c.l.b16 %v448
        %v650 = vunpack.c.h.b16 %v448
        %v651 = vunpack.c.l.b16 %v449
        %v652 = vunpack.c.h.b16 %v449
        %v653 = vunpack.c.l.b16 %v450
        %v654 = vunpack.c.h.b16 %v450
        %v655 = vunpack.c.l.b16 %v451
        %v656 = vunpack.c.h.b16 %v451
        %v657 = vunpack.c.l.b16 %v452
        %v658 = vunpack.c.h.b16 %v452
        %v659 = vunpack.c.l.b16 %v453
        %v660 = vunpack.c.h.b16 %v453
        %v661 = vunpack.c.l.b16 %v454
        %v662 = vunpack.c.h.b16 %v454
        %v663 = vunpack.c.l.b16 %v455
        %v664 = vunpack.c.h.b16 %v455
        %v665 = vunpack.c.l.b16 %v456
        %v666 = vunpack.c.h.b16 %v456
        %v667 = vunpack.c.l.b16 %v457
        %v668 = vunpack.c.h.b16 %v457
        %v669 = vunpack.c.l.b16 %v458
        %v670 = vunpack.c.h.b16 %v458
        %v671 = vunpack.c.l.b16 %v459
        %v672 = vunpack.c.h.b16 %v459
        %v673 = vunpack.c.l.b16 %v460
        %v674 = vunpack.c.h.b16 %v460
        %v675 = vunpack.c.l.b16 %v461
        %v676 = vunpack.c.h.b16 %v461
        %v677 = vunpack.c.l.b16 %v462
        %v678 = vunpack.c.h.b16 %v462
        %v679 = vunpack.c.l.b16 %v463
        %v680 = vunpack.c.h.b16 %v463
        %v681 = vunpack.c.l.b16 %v464
        %v682 = vunpack.c.h.b16 %v464
        %v683 = vunpack.c.l.b16 %v465
        %v684 = vunpack.c.h.b16 %v465
        %v685 = vunpack.c.l.b16 %v466
        %v686 = vunpack.c.h.b16 %v466
        %v687 = vunpack.c.l.b16 %v467
        %v688 = vunpack.c.h.b16 %v467
        %v689 = vunpack.c.l.b16 %v468
        %v690 = vunpack.c.h.b16 %v468
        %v691 = vunpack.c.l.b16 %v469
        %v692 = vunpack.c.h.b16 %v469
        %v693 = vunpack.c.l.b16 %v470
        %v694 = vunpack.c.h.b16 %v470
        %v695 = vunpack.c.l.b16 %v471
        %v696 = vunpack.c.h.b16 %v471
        %v697 = vunpack.c.l.b16 %v472
        %v698 = vunpack.c.h.b16 %v472
        %v699 = vunpack.c.l.b16 %v473
        %v700 = vunpack.c.h.b16 %v473
        %v701 = vunpack.c.l.b16 %v474
        %v702 = vunpack.c.h.b16 %v474
        %v703 = vunpack.c.l.b16 %v475
        %v704 = vunpack.c.h.b16 %v475
        %v705 = vunpack.c.l.b16 %v476
        %v706 = vunpack.c.h.b16 %v476
        %v707 = vunpack.c.l.b16 %v477
        %v708 = vunpack.c.h.b16 %v477
        %v709 = vunpack.c.l.b16 %v478
        %v710 = vunpack.c.h.b16 %v478
        %v711 = vunpack.c.l.b16 %v479
        %v712 = vunpack.c.h.b16 %v479
        %v713 = vunpack.c.l.b16 %v480
        %v714 = vunpack.c.h.b16 %v480
        %v715 = vunpack.c.l.b16 %v481
        %v716 = vunpack.c.h.b16 %v481
        %v717 = vunpack.c.l.b16 %v482
        %v718 = vunpack.c.h.b16 %v482
        %v719 = vunpack.c.l.b16 %v483
        %v720 = vunpack.c.h.b16 %v483
        %v721 = vunpack.c.l.b16 %v484
        %v722 = vunpack.c.h.b16 %v484
        %v723 = vunpack.c.l.b16 %v485
        %v724 = vunpack.c.h.b16 %v485
        %v725 = vunpack.c.l.b16 %v486
        %v726 = vunpack.c.h.b16 %v486
        %v727 = vunpack.c.l.b16 %v487
        %v728 = vunpack.c.h.b16 %v487
        %v729 = vunpack.c.l.b16 %v488
        %v730 = vunpack.c.h.b16 %v488
        %v731 = vunpack.c.l.b16 %v489
        %v732 = vunpack.c.h.b16 %v489
        %v733 = vunpack.c.l.b16 %v490
        %v734 = vunpack.c.h.b16 %v490
        %v735 = vunpack.c.l.b16 %v491
        %v736 = vunpack.c.h.b16 %v491
        %v737 = vunpack.c.l.b16 %v492
        %v738 = vunpack.c.h.b16 %v492
        %v739 = vunpack.c.l.b16 %v493
        %v740 = vunpack.c.h.b16 %v493
        %v741 = vunpack.c.l.b16 %v494
        %v742 = vunpack.c.h.b16 %v494
        %v743 = vunpack.c.l.b16 %v495
        %v744 = vunpack.c.h.b16 %v495
        %v745 = vunpack.c.l.b16 %v496
        %v746 = vunpack.c.h.b16 %v496
        %v747 = vunpack.c.l.b16 %v497
        %v748 = vunpack.c.h.b16 %v497
        %v749 = vunpack.c.l.b16 %v498
        %v750 = vunpack.c.h.b16 %v498
        %v751 = vunpack.c.l.b16 %v499
        %v752 = vunpack.c.h.b16 %v499
        %v753 = vunpack.c.l.b16 %v500
        %v754 = vunpack.c.h.b16 %v500
        %v755 = vunpack.c.l.b16 %v501
        %v756 = vunpack.c.h.b16 %v501
        %v757 = vunpack.c.l.b16 %v502
        %v758 = vunpack.c.h.b16 %v502
        %v759 = vpack.c.b16 %v635, %v631
        %v760 = vpack.c.b16 %v636, %v632
        %v761 = vpack.c.b16 %v637, %v633
        %v762 = vpack.c.b16 %v638, %v634
        %v763 = vpack.c.b16 %v643, %v639
        %v764 = vpack.c.b16 %v644, %v640
        %v765 = vpack.c.b16 %v645, %v641
        %v766 = vpack.c.b16 %v646, %v642
        %v767 = vpack.c.b16 %v651, %v647
        %v768 = vpack.c.b16 %v652, %v648
        %v769 = vpack.c.b16 %v653, %v649
        %v770 = vpack.c.b16 %v654, %v650
        %v771 = vpack.c.b16 %v659, %v655
        %v772 = vpack.c.b16 %v660, %v656
        %v773 = vpack.c.b16 %v661, %v657
        %v774 = vpack.c.b16 %v662, %v658
        %v775 = vpack.c.b16 %v667, %v663
        %v776 = vpack.c.b16 %v668, %v664
        %v777 = vpack.c.b16 %v669, %v665
        %v778 = vpack.c.b16 %v670, %v666
        %v779 = vpack.c.b16 %v675, %v671
        %v780 = vpack.c.b16 %v676, %v672
        %v781 = vpack.c.b16 %v677, %v673
        %v782 = vpack.c.b16 %v678, %v674
        %v783 = vpack.c.b16 %v683, %v679
        %v784 = vpack.c.b16 %v684, %v680
        %v785 = vpack.c.b16 %v685, %v681
        %v786 = vpack.c.b16 %v686, %v682
        %v787 = vpack.c.b16 %v691, %v687
        %v788 = vpack.c.b16 %v692, %v688
        %v789 = vpack.c.b16 %v693, %v689
        %v790 = vpack.c.b16 %v694, %v690
        %v791 = vpack.c.b16 %v699, %v695
        %v792 = vpack.c.b16 %v700, %v696
        %v793 = vpack.c.b16 %v701, %v697
        %v794 = vpack.c.b16 %v702, %v698
        %v795 = vpack.c.b16 %v707, %v703
        %v796 = vpack.c.b16 %v708, %v704
        %v797 = vpack.c.b16 %v709, %v705
        %v798 = vpack.c.b16 %v710, %v706
        %v799 = vpack.c.b16 %v715, %v711
        %v800 = vpack.c.b16 %v716, %v712
        %v801 = vpack.c.b16 %v717, %v713
        %v802 = vpack.c.b16 %v718, %v714
        %v803 = vpack.c.b16 %v723, %v719
        %v804 = vpack.c.b16 %v724, %v720
        %v805 = vpack.c.b16 %v725, %v721
        %v806 = vpack.c.b16 %v726, %v722
        %v807 = vpack.c.b16 %v731, %v727
        %v808 = vpack.c.b16 %v732, %v728
        %v809 = vpack.c.b16 %v733, %v729
        %v810 = vpack.c.b16 %v734, %v730
        %v811 = vpack.c.b16 %v739, %v735
        %v812 = vpack.c.b16 %v740, %v736
        %v813 = vpack.c.b16 %v741, %v737
        %v814 = vpack.c.b16 %v742, %v738
        %v815 = vpack.c.b16 %v747, %v743
        %v816 = vpack.c.b16 %v748, %v744
        %v817 = vpack.c.b16 %v749, %v745
        %v818 = vpack.c.b16 %v750, %v746
        %v819 = vpack.c.b16 %v755, %v751
        %v820 = vpack.c.b16 %v756, %v752
        %v821 = vpack.c.b16 %v757, %v753
        %v822 = vpack.c.b16 %v758, %v754
        %v951 = vunpack.c.l.b16 %v503
        %v952 = vunpack.c.h.b16 %v503
        %v953 = vunpack.c.l.b16 %v504
        %v954 = vunpack.c.h.b16 %v504
        %v955 = vunpack.c.l.b16 %v505
        %v956 = vunpack.c.h.b16 %v505
        %v957 = vunpack.c.l.b16 %v506
        %v958 = vunpack.c.h.b16 %v506
        %v959 = vunpack.c.l.b16 %v507
        %v960 = vunpack.c.h.b16 %v507
        %v961 = vunpack.c.l.b16 %v508
        %v962 = vunpack.c.h.b16 %v508
        %v963 = vunpack.c.l.b16 %v509
        %v964 = vunpack.c.h.b16 %v509
        %v965 = vunpack.c.l.b16 %v510
        %v966 = vunpack.c.h.b16 %v510
        %v967 = vunpack.c.l.b16 %v511
        %v968 = vunpack.c.h.b16 %v511
        %v969 = vunpack.c.l.b16 %v512
        %v970 = vunpack.c.h.b16 %v512
        %v971 = vunpack.c.l.b16 %v513
        %v972 = vunpack.c.h.b16 %v513
        %v973 = vunpack.c.l.b16 %v514
        %v974 = vunpack.c.h.b16 %v514
        %v975 = vunpack.c.l.b16 %v515
        %v976 = vunpack.c.h.b16 %v515
        %v977 = vunpack.c.l.b16 %v516
        %v978 = vunpack.c.h.b16 %v516
        %v979 = vunpack.c.l.b16 %v517
        %v980 = vunpack.c.h.b16 %v517
        %v981 = vunpack.c.l.b16 %v518
        %v982 = vunpack.c.h.b16 %v518
        %v983 = vunpack.c.l.b16 %v519
        %v984 = vunpack.c.h.b16 %v519
        %v985 = vunpack.c.l.b16 %v520
        %v986 = vunpack.c.h.b16 %v520
        %v987 = vunpack.c.l.b16 %v521
        %v988 = vunpack.c.h.b16 %v521
        %v989 = vunpack.c.l.b16 %v522
        %v990 = vunpack.c.h.b16 %v522
        %v991 = vunpack.c.l.b16 %v523
        %v992 = vunpack.c.h.b16 %v523
        %v993 = vunpack.c.l.b16 %v524
        %v994 = vunpack.c.h.b16 %v524
        %v995 = vunpack.c.l.b16 %v525
        %v996 = vunpack.c.h.b16 %v525
        %v997 = vunpack.c.l.b16 %v526
        %v998 = vunpack.c.h.b16 %v526
        %v999 = vunpack.c.l.b16 %v527
        %v1000 = vunpack.c.h.b16 %v527
        %v1001 = vunpack.c.l.b16 %v528
        %v1002 = vunpack.c.h.b16 %v528
        %v1003 = vunpack.c.l.b16 %v529
        %v1004 = vunpack.c.h.b16 %v529
        %v1005 = vunpack.c.l.b16 %v530
        %v1006 = vunpack.c.h.b16 %v530
        %v1007 = vunpack.c.l.b16 %v531
        %v1008 = vunpack.c.h.b16 %v531
        %v1009 = vunpack.c.l.b16 %v532
        %v1010 = vunpack.c.h.b16 %v532
        %v1011 = vunpack.c.l.b16 %v533
        %v1012 = vunpack.c.h.b16 %v533
        %v1013 = vunpack.c.l.b16 %v534
        %v1014 = vunpack.c.h.b16 %v534
        %v1015 = vunpack.c.l.b16 %v535
        %v1016 = vunpack.c.h.b16 %v535
        %v1017 = vunpack.c.l.b16 %v536
        %v1018 = vunpack.c.h.b16 %v536
        %v1019 = vunpack.c.l.b16 %v537
        %v1020 = vunpack.c.h.b16 %v537
        %v1021 = vunpack.c.l.b16 %v538
        %v1022 = vunpack.c.h.b16 %v538
        %v1023 = vunpack.c.l.b16 %v539
        %v1024 = vunpack.c.h.b16 %v539
        %v1025 = vunpack.c.l.b16 %v540
        %v1026 = vunpack.c.h.b16 %v540
        %v1027 = vunpack.c.l.b16 %v541
        %v1028 = vunpack.c.h.b16 %v541
        %v1029 = vunpack.c.l.b16 %v542
        %v1030 = vunpack.c.h.b16 %v542
        %v1031 = vunpack.c.l.b16 %v543
        %v1032 = vunpack.c.h.b16 %v543
        %v1033 = vunpack.c.l.b16 %v544
        %v1034 = vunpack.c.h.b16 %v544
        %v1035 = vunpack.c.l.b16 %v545
        %v1036 = vunpack.c.h.b16 %v545
        %v1037 = vunpack.c.l.b16 %v546
        %v1038 = vunpack.c.h.b16 %v546
        %v1039 = vunpack.c.l.b16 %v547
        %v1040 = vunpack.c.h.b16 %v547
        %v1041 = vunpack.c.l.b16 %v548
        %v1042 = vunpack.c.h.b16 %v548
        %v1043 = vunpack.c.l.b16 %v549
        %v1044 = vunpack.c.h.b16 %v549
        %v1045 = vunpack.c.l.b16 %v550
        %v1046 = vunpack.c.h.b16 %v550
        %v1047 = vunpack.c.l.b16 %v551
        %v1048 = vunpack.c.h.b16 %v551
        %v1049 = vunpack.c.l.b16 %v552
        %v1050 = vunpack.c.h.b16 %v552
        %v1051 = vunpack.c.l.b16 %v553
        %v1052 = vunpack.c.h.b16 %v553
        %v1053 = vunpack.c.l.b16 %v554
        %v1054 = vunpack.c.h.b16 %v554
        %v1055 = vunpack.c.l.b16 %v555
        %v1056 = vunpack.c.h.b16 %v555
        %v1057 = vunpack.c.l.b16 %v556
        %v1058 = vunpack.c.h.b16 %v556
        %v1059 = vunpack.c.l.b16 %v557
        %v1060 = vunpack.c.h.b16 %v557
        %v1061 = vunpack.c.l.b16 %v558
        %v1062 = vunpack.c.h.b16 %v558
        %v1063 = vunpack.c.l.b16 %v559
        %v1064 = vunpack.c.h.b16 %v559
        %v1065 = vunpack.c.l.b16 %v560
        %v1066 = vunpack.c.h.b16 %v560
        %v1067 = vunpack.c.l.b16 %v561
        %v1068 = vunpack.c.h.b16 %v561
        %v1069 = vunpack.c.l.b16 %v562
        %v1070 = vunpack.c.h.b16 %v562
        %v1071 = vunpack.c.l.b16 %v563
        %v1072 = vunpack.c.h.b16 %v563
        %v1073 = vunpack.c.l.b16 %v564
        %v1074 = vunpack.c.h.b16 %v564
        %v1075 = vunpack.c.l.b16 %v565
        %v1076 = vunpack.c.h.b16 %v565
        %v1077 = vunpack.c.l.b16 %v566
        %v1078 = vunpack.c.h.b16 %v566
        %v1079 = vpack.c.b16 %v953, %v951
        %v1080 = vpack.c.b16 %v954, %v952
        %v1081 = vpack.c.b16 %v957, %v955
        %v1082 = vpack.c.b16 %v958, %v956
        %v1083 = vpack.c.b16 %v961, %v959
        %v1084 = vpack.c.b16 %v962, %v960
        %v1085 = vpack.c.b16 %v965, %v963
        %v1086 = vpack.c.b16 %v966, %v964
        %v1087 = vpack.c.b16 %v969, %v967
        %v1088 = vpack.c.b16 %v970, %v968
        %v1089 = vpack.c.b16 %v973, %v971
        %v1090 = vpack.c.b16 %v974, %v972
        %v1091 = vpack.c.b16 %v977, %v975
        %v1092 = vpack.c.b16 %v978, %v976
        %v1093 = vpack.c.b16 %v981, %v979
        %v1094 = vpack.c.b16 %v982, %v980
        %v1095 = vpack.c.b16 %v985, %v983
        %v1096 = vpack.c.b16 %v986, %v984
        %v1097 = vpack.c.b16 %v989, %v987
        %v1098 = vpack.c.b16 %v990, %v988
        %v1099 = vpack.c.b16 %v993, %v991
        %v1100 = vpack.c.b16 %v994, %v992
        %v1101 = vpack.c.b16 %v997, %v995
        %v1102 = vpack.c.b16 %v998, %v996
        %v1103 = vpack.c.b16 %v1001, %v999
        %v1104 = vpack.c.b16 %v1002, %v1000
        %v1105 = vpack.c.b16 %v1005, %v1003
        %v1106 = vpack.c.b16 %v1006, %v1004
        %v1107 = vpack.c.b16 %v1009, %v1007
        %v1108 = vpack.c.b16 %v1010, %v1008
        %v1109 = vpack.c.b16 %v1013, %v1011
        %v1110 = vpack.c.b16 %v1014, %v1012
        %v1111 = vpack.c.b16 %v1017, %v1015
        %v1112 = vpack.c.b16 %v1018, %v1016
        %v1113 = vpack.c.b16 %v1021, %v1019
        %v1114 = vpack.c.b16 %v1022, %v1020
        %v1115 = vpack.c.b16 %v1025, %v1023
        %v1116 = vpack.c.b16 %v1026, %v1024
        %v1117 = vpack.c.b16 %v1029, %v1027
        %v1118 = vpack.c.b16 %v1030, %v1028
        %v1119 = vpack.c.b16 %v1033, %v1031
        %v1120 = vpack.c.b16 %v1034, %v1032
        %v1121 = vpack.c.b16 %v1037, %v1035
        %v1122 = vpack.c.b16 %v1038, %v1036
        %v1123 = vpack.c.b16 %v1041, %v1039
        %v1124 = vpack.c.b16 %v1042, %v1040
        %v1125 = vpack.c.b16 %v1045, %v1043
        %v1126 = vpack.c.b16 %v1046, %v1044
        %v1127 = vpack.c.b16 %v1049, %v1047
        %v1128 = vpack.c.b16 %v1050, %v1048
        %v1129 = vpack.c.b16 %v1053, %v1051
        %v1130 = vpack.c.b16 %v1054, %v1052
        %v1131 = vpack.c.b16 %v1057, %v1055
        %v1132 = vpack.c.b16 %v1058, %v1056
        %v1133 = vpack.c.b16 %v1061, %v1059
        %v1134 = vpack.c.b16 %v1062, %v1060
        %v1135 = vpack.c.b16 %v1065, %v1063
        %v1136 = vpack.c.b16 %v1066, %v1064
        %v1137 = vpack.c.b16 %v1069, %v1067
        %v1138 = vpack.c.b16 %v1070, %v1068
        %v1139 = vpack.c.b16 %v1073, %v1071
        %v1140 = vpack.c.b16 %v1074, %v1072
        %v1141 = vpack.c.b16 %v1077, %v1075
        %v1142 = vpack.c.b16 %v1078, %v1076
        %1207 = vmatpush.bf16.msra.mxu0 %v1093
        %1208 = vmatpush.bf16.msra.mxu0 %v1091
        %1209 = vmatpush.bf16.msra.mxu0 %v1089
        %1210 = vmatpush.bf16.msra.mxu0 %v1087
        %1211 = vmatpush.bf16.msra.mxu0 %v1085
        %1212 = vmatpush.bf16.msra.mxu0 %v1083
        %1213 = vmatpush.bf16.msra.mxu0 %v1081
        %1214 = vmatpush.bf16.msra.mxu0 %v1079
        %1215 = vmatmul.bf16.gmra.mxu0 %v759
        %v1216 = vpop.f32.mrf.mxu0
        %v1217 = vadd.f32 0.0, %v1216
        %v1218 = vpop.f32.mrf.mxu0
        %v1219 = vadd.f32 0.0, %v1218
        %1220 = vmatmul.bf16.gmra.mxu0 %v763
        %v1221 = vpop.f32.mrf.mxu0
        %v1222 = vadd.f32 0.0, %v1221
        %v1223 = vpop.f32.mrf.mxu0
        %v1224 = vadd.f32 0.0, %v1223
        %1225 = vmatmul.bf16.gmra.mxu0 %v767
        %v1226 = vpop.f32.mrf.mxu0
        %v1227 = vadd.f32 0.0, %v1226
        %v1228 = vpop.f32.mrf.mxu0
        %v1229 = vadd.f32 0.0, %v1228
        %1230 = vmatmul.bf16.gmra.mxu0 %v771
        %v1231 = vpop.f32.mrf.mxu0
        %v1232 = vadd.f32 0.0, %v1231
        %v1233 = vpop.f32.mrf.mxu0
        %v1234 = vadd.f32 0.0, %v1233
        %1235 = vmatmul.bf16.gmra.mxu0 %v775
        %v1236 = vpop.f32.mrf.mxu0
        %v1237 = vadd.f32 0.0, %v1236
        %v1238 = vpop.f32.mrf.mxu0
        %v1239 = vadd.f32 0.0, %v1238
        %1240 = vmatmul.bf16.gmra.mxu0 %v779
        %v1241 = vpop.f32.mrf.mxu0
        %v1242 = vadd.f32 0.0, %v1241
        %v1243 = vpop.f32.mrf.mxu0
        %v1244 = vadd.f32 0.0, %v1243
        %1245 = vmatmul.bf16.gmra.mxu0 %v783
        %v1246 = vpop.f32.mrf.mxu0
        %v1247 = vadd.f32 0.0, %v1246
        %v1248 = vpop.f32.mrf.mxu0
        %v1249 = vadd.f32 0.0, %v1248
        %1250 = vmatmul.bf16.gmra.mxu0 %v787
        %v1251 = vpop.f32.mrf.mxu0
        %v1252 = vadd.f32 0.0, %v1251
        %v1253 = vpop.f32.mrf.mxu0
        %v1254 = vadd.f32 0.0, %v1253
        %1255 = vmatmul.bf16.gmra.mxu0 %v791
        %v1256 = vpop.f32.mrf.mxu0
        %v1257 = vadd.f32 0.0, %v1256
        %v1258 = vpop.f32.mrf.mxu0
        %v1259 = vadd.f32 0.0, %v1258
        %1260 = vmatmul.bf16.gmra.mxu0 %v795
        %v1261 = vpop.f32.mrf.mxu0
        %v1262 = vadd.f32 0.0, %v1261
        %v1263 = vpop.f32.mrf.mxu0
        %v1264 = vadd.f32 0.0, %v1263
        %1265 = vmatmul.bf16.gmra.mxu0 %v799
        %v1266 = vpop.f32.mrf.mxu0
        %v1267 = vadd.f32 0.0, %v1266
        %v1268 = vpop.f32.mrf.mxu0
        %v1269 = vadd.f32 0.0, %v1268
        %1270 = vmatmul.bf16.gmra.mxu0 %v803
        %v1271 = vpop.f32.mrf.mxu0
        %v1272 = vadd.f32 0.0, %v1271
        %v1273 = vpop.f32.mrf.mxu0
        %v1274 = vadd.f32 0.0, %v1273
        %1275 = vmatmul.bf16.gmra.mxu0 %v807
        %v1276 = vpop.f32.mrf.mxu0
        %v1277 = vadd.f32 0.0, %v1276
        %v1278 = vpop.f32.mrf.mxu0
        %v1279 = vadd.f32 0.0, %v1278
        %1280 = vmatmul.bf16.gmra.mxu0 %v811
        %v1281 = vpop.f32.mrf.mxu0
        %v1282 = vadd.f32 0.0, %v1281
        %v1283 = vpop.f32.mrf.mxu0
        %v1284 = vadd.f32 0.0, %v1283
        %1285 = vmatmul.bf16.gmra.mxu0 %v815
        %v1286 = vpop.f32.mrf.mxu0
        %v1287 = vadd.f32 0.0, %v1286
        %v1288 = vpop.f32.mrf.mxu0
        %v1289 = vadd.f32 0.0, %v1288
        %1290 = vmatmul.bf16.gmra.mxu0 %v819
        %v1291 = vpop.f32.mrf.mxu0
        %v1292 = vadd.f32 0.0, %v1291
        %v1293 = vpop.f32.mrf.mxu0
        %v1294 = vadd.f32 0.0, %v1293
        %1295 = vdwg.mxu0
        %1296 = vmatpush.bf16.msra.mxu0 %v1109
        %1297 = vmatpush.bf16.msra.mxu0 %v1107
        %1298 = vmatpush.bf16.msra.mxu0 %v1105
        %1299 = vmatpush.bf16.msra.mxu0 %v1103
        %1300 = vmatpush.bf16.msra.mxu0 %v1101
        %1301 = vmatpush.bf16.msra.mxu0 %v1099
        %1302 = vmatpush.bf16.msra.mxu0 %v1097
        %1303 = vmatpush.bf16.msra.mxu0 %v1095
        %1304 = vmatmul.bf16.gmra.mxu0 %v760
        %v1305 = vpop.f32.mrf.mxu0
        %v1306 = vadd.f32 %v1217, %v1305
        %v1307 = vpop.f32.mrf.mxu0
        %v1308 = vadd.f32 %v1219, %v1307
        %1309 = vmatmul.bf16.gmra.mxu0 %v764
        %v1310 = vpop.f32.mrf.mxu0
        %v1311 = vadd.f32 %v1222, %v1310
        %v1312 = vpop.f32.mrf.mxu0
        %v1313 = vadd.f32 %v1224, %v1312
        %1314 = vmatmul.bf16.gmra.mxu0 %v768
        %v1315 = vpop.f32.mrf.mxu0
        %v1316 = vadd.f32 %v1227, %v1315
        %v1317 = vpop.f32.mrf.mxu0
        %v1318 = vadd.f32 %v1229, %v1317
        %1319 = vmatmul.bf16.gmra.mxu0 %v772
        %v1320 = vpop.f32.mrf.mxu0
        %v1321 = vadd.f32 %v1232, %v1320
        %v1322 = vpop.f32.mrf.mxu0
        %v1323 = vadd.f32 %v1234, %v1322
        %1324 = vmatmul.bf16.gmra.mxu0 %v776
        %v1325 = vpop.f32.mrf.mxu0
        %v1326 = vadd.f32 %v1237, %v1325
        %v1327 = vpop.f32.mrf.mxu0
        %v1328 = vadd.f32 %v1239, %v1327
        %1329 = vmatmul.bf16.gmra.mxu0 %v780
        %v1330 = vpop.f32.mrf.mxu0
        %v1331 = vadd.f32 %v1242, %v1330
        %v1332 = vpop.f32.mrf.mxu0
        %v1333 = vadd.f32 %v1244, %v1332
        %1334 = vmatmul.bf16.gmra.mxu0 %v784
        %v1335 = vpop.f32.mrf.mxu0
        %v1336 = vadd.f32 %v1247, %v1335
        %v1337 = vpop.f32.mrf.mxu0
        %v1338 = vadd.f32 %v1249, %v1337
        %1339 = vmatmul.bf16.gmra.mxu0 %v788
        %v1340 = vpop.f32.mrf.mxu0
        %v1341 = vadd.f32 %v1252, %v1340
        %v1342 = vpop.f32.mrf.mxu0
        %v1343 = vadd.f32 %v1254, %v1342
        %1344 = vmatmul.bf16.gmra.mxu0 %v792
        %v1345 = vpop.f32.mrf.mxu0
        %v1346 = vadd.f32 %v1257, %v1345
        %v1347 = vpop.f32.mrf.mxu0
        %v1348 = vadd.f32 %v1259, %v1347
        %1349 = vmatmul.bf16.gmra.mxu0 %v796
        %v1350 = vpop.f32.mrf.mxu0
        %v1351 = vadd.f32 %v1262, %v1350
        %v1352 = vpop.f32.mrf.mxu0
        %v1353 = vadd.f32 %v1264, %v1352
        %1354 = vmatmul.bf16.gmra.mxu0 %v800
        %v1355 = vpop.f32.mrf.mxu0
        %v1356 = vadd.f32 %v1267, %v1355
        %v1357 = vpop.f32.mrf.mxu0
        %v1358 = vadd.f32 %v1269, %v1357
        %1359 = vmatmul.bf16.gmra.mxu0 %v804
        %v1360 = vpop.f32.mrf.mxu0
        %v1361 = vadd.f32 %v1272, %v1360
        %v1362 = vpop.f32.mrf.mxu0
        %v1363 = vadd.f32 %v1274, %v1362
        %1364 = vmatmul.bf16.gmra.mxu0 %v808
        %v1365 = vpop.f32.mrf.mxu0
        %v1366 = vadd.f32 %v1277, %v1365
        %v1367 = vpop.f32.mrf.mxu0
        %v1368 = vadd.f32 %v1279, %v1367
        %1369 = vmatmul.bf16.gmra.mxu0 %v812
        %v1370 = vpop.f32.mrf.mxu0
        %v1371 = vadd.f32 %v1282, %v1370
        %v1372 = vpop.f32.mrf.mxu0
        %v1373 = vadd.f32 %v1284, %v1372
        %1374 = vmatmul.bf16.gmra.mxu0 %v816
        %v1375 = vpop.f32.mrf.mxu0
        %v1376 = vadd.f32 %v1287, %v1375
        %v1377 = vpop.f32.mrf.mxu0
        %v1378 = vadd.f32 %v1289, %v1377
        %1379 = vmatmul.bf16.gmra.mxu0 %v820
        %v1380 = vpop.f32.mrf.mxu0
        %v1381 = vadd.f32 %v1292, %v1380
        %v1382 = vpop.f32.mrf.mxu0
        %v1383 = vadd.f32 %v1294, %v1382
        %1384 = vdwg.mxu0
        %1385 = vmatpush.bf16.msra.mxu0 %v1125
        %1386 = vmatpush.bf16.msra.mxu0 %v1123
        %1387 = vmatpush.bf16.msra.mxu0 %v1121
        %1388 = vmatpush.bf16.msra.mxu0 %v1119
        %1389 = vmatpush.bf16.msra.mxu0 %v1117
        %1390 = vmatpush.bf16.msra.mxu0 %v1115
        %1391 = vmatpush.bf16.msra.mxu0 %v1113
        %1392 = vmatpush.bf16.msra.mxu0 %v1111
        %1393 = vmatmul.bf16.gmra.mxu0 %v761
        %v1394 = vpop.f32.mrf.mxu0
        %v1395 = vadd.f32 %v1306, %v1394
        %v1396 = vpop.f32.mrf.mxu0
        %v1397 = vadd.f32 %v1308, %v1396
        %1398 = vmatmul.bf16.gmra.mxu0 %v765
        %v1399 = vpop.f32.mrf.mxu0
        %v1400 = vadd.f32 %v1311, %v1399
        %v1401 = vpop.f32.mrf.mxu0
        %v1402 = vadd.f32 %v1313, %v1401
        %1403 = vmatmul.bf16.gmra.mxu0 %v769
        %v1404 = vpop.f32.mrf.mxu0
        %v1405 = vadd.f32 %v1316, %v1404
        %v1406 = vpop.f32.mrf.mxu0
        %v1407 = vadd.f32 %v1318, %v1406
        %1408 = vmatmul.bf16.gmra.mxu0 %v773
        %v1409 = vpop.f32.mrf.mxu0
        %v1410 = vadd.f32 %v1321, %v1409
        %v1411 = vpop.f32.mrf.mxu0
        %v1412 = vadd.f32 %v1323, %v1411
        %1413 = vmatmul.bf16.gmra.mxu0 %v777
        %v1414 = vpop.f32.mrf.mxu0
        %v1415 = vadd.f32 %v1326, %v1414
        %v1416 = vpop.f32.mrf.mxu0
        %v1417 = vadd.f32 %v1328, %v1416
        %1418 = vmatmul.bf16.gmra.mxu0 %v781
        %v1419 = vpop.f32.mrf.mxu0
        %v1420 = vadd.f32 %v1331, %v1419
        %v1421 = vpop.f32.mrf.mxu0
        %v1422 = vadd.f32 %v1333, %v1421
        %1423 = vmatmul.bf16.gmra.mxu0 %v785
        %v1424 = vpop.f32.mrf.mxu0
        %v1425 = vadd.f32 %v1336, %v1424
        %v1426 = vpop.f32.mrf.mxu0
        %v1427 = vadd.f32 %v1338, %v1426
        %1428 = vmatmul.bf16.gmra.mxu0 %v789
        %v1429 = vpop.f32.mrf.mxu0
        %v1430 = vadd.f32 %v1341, %v1429
        %v1431 = vpop.f32.mrf.mxu0
        %v1432 = vadd.f32 %v1343, %v1431
        %1433 = vmatmul.bf16.gmra.mxu0 %v793
        %v1434 = vpop.f32.mrf.mxu0
        %v1435 = vadd.f32 %v1346, %v1434
        %v1436 = vpop.f32.mrf.mxu0
        %v1437 = vadd.f32 %v1348, %v1436
        %1438 = vmatmul.bf16.gmra.mxu0 %v797
        %v1439 = vpop.f32.mrf.mxu0
        %v1440 = vadd.f32 %v1351, %v1439
        %v1441 = vpop.f32.mrf.mxu0
        %v1442 = vadd.f32 %v1353, %v1441
        %1443 = vmatmul.bf16.gmra.mxu0 %v801
        %v1444 = vpop.f32.mrf.mxu0
        %v1445 = vadd.f32 %v1356, %v1444
        %v1446 = vpop.f32.mrf.mxu0
        %v1447 = vadd.f32 %v1358, %v1446
        %1448 = vmatmul.bf16.gmra.mxu0 %v805
        %v1449 = vpop.f32.mrf.mxu0
        %v1450 = vadd.f32 %v1361, %v1449
        %v1451 = vpop.f32.mrf.mxu0
        %v1452 = vadd.f32 %v1363, %v1451
        %1453 = vmatmul.bf16.gmra.mxu0 %v809
        %v1454 = vpop.f32.mrf.mxu0
        %v1455 = vadd.f32 %v1366, %v1454
        %v1456 = vpop.f32.mrf.mxu0
        %v1457 = vadd.f32 %v1368, %v1456
        %1458 = vmatmul.bf16.gmra.mxu0 %v813
        %v1459 = vpop.f32.mrf.mxu0
        %v1460 = vadd.f32 %v1371, %v1459
        %v1461 = vpop.f32.mrf.mxu0
        %v1462 = vadd.f32 %v1373, %v1461
        %1463 = vmatmul.bf16.gmra.mxu0 %v817
        %v1464 = vpop.f32.mrf.mxu0
        %v1465 = vadd.f32 %v1376, %v1464
        %v1466 = vpop.f32.mrf.mxu0
        %v1467 = vadd.f32 %v1378, %v1466
        %1468 = vmatmul.bf16.gmra.mxu0 %v821
        %v1469 = vpop.f32.mrf.mxu0
        %v1470 = vadd.f32 %v1381, %v1469
        %v1471 = vpop.f32.mrf.mxu0
        %v1472 = vadd.f32 %v1383, %v1471
        %1473 = vdwg.mxu0
        %1474 = vmatpush.bf16.msra.mxu0 %v1141
        %1475 = vmatpush.bf16.msra.mxu0 %v1139
        %1476 = vmatpush.bf16.msra.mxu0 %v1137
        %1477 = vmatpush.bf16.msra.mxu0 %v1135
        %1478 = vmatpush.bf16.msra.mxu0 %v1133
        %1479 = vmatpush.bf16.msra.mxu0 %v1131
        %1480 = vmatpush.bf16.msra.mxu0 %v1129
        %1481 = vmatpush.bf16.msra.mxu0 %v1127
        %1482 = vmatmul.bf16.gmra.mxu0 %v762
        %v1483 = vpop.f32.mrf.mxu0
        %v1484 = vadd.f32 %v1395, %v1483
        %v1485 = vpop.f32.mrf.mxu0
        %v1486 = vadd.f32 %v1397, %v1485
        %1487 = vmatmul.bf16.gmra.mxu0 %v766
        %v1488 = vpop.f32.mrf.mxu0
        %v1489 = vadd.f32 %v1400, %v1488
        %v1490 = vpop.f32.mrf.mxu0
        %v1491 = vadd.f32 %v1402, %v1490
        %1492 = vmatmul.bf16.gmra.mxu0 %v770
        %v1493 = vpop.f32.mrf.mxu0
        %v1494 = vadd.f32 %v1405, %v1493
        %v1495 = vpop.f32.mrf.mxu0
        %v1496 = vadd.f32 %v1407, %v1495
        %1497 = vmatmul.bf16.gmra.mxu0 %v774
        %v1498 = vpop.f32.mrf.mxu0
        %v1499 = vadd.f32 %v1410, %v1498
        %v1500 = vpop.f32.mrf.mxu0
        %v1501 = vadd.f32 %v1412, %v1500
        %1502 = vmatmul.bf16.gmra.mxu0 %v778
        %v1503 = vpop.f32.mrf.mxu0
        %v1504 = vadd.f32 %v1415, %v1503
        %v1505 = vpop.f32.mrf.mxu0
        %v1506 = vadd.f32 %v1417, %v1505
        %1507 = vmatmul.bf16.gmra.mxu0 %v782
        %v1508 = vpop.f32.mrf.mxu0
        %v1509 = vadd.f32 %v1420, %v1508
        %v1510 = vpop.f32.mrf.mxu0
        %v1511 = vadd.f32 %v1422, %v1510
        %1512 = vmatmul.bf16.gmra.mxu0 %v786
        %v1513 = vpop.f32.mrf.mxu0
        %v1514 = vadd.f32 %v1425, %v1513
        %v1515 = vpop.f32.mrf.mxu0
        %v1516 = vadd.f32 %v1427, %v1515
        %1517 = vmatmul.bf16.gmra.mxu0 %v790
        %v1518 = vpop.f32.mrf.mxu0
        %v1519 = vadd.f32 %v1430, %v1518
        %v1520 = vpop.f32.mrf.mxu0
        %v1521 = vadd.f32 %v1432, %v1520
        %1522 = vmatmul.bf16.gmra.mxu0 %v794
        %v1523 = vpop.f32.mrf.mxu0
        %v1524 = vadd.f32 %v1435, %v1523
        %v1525 = vpop.f32.mrf.mxu0
        %v1526 = vadd.f32 %v1437, %v1525
        %1527 = vmatmul.bf16.gmra.mxu0 %v798
        %v1528 = vpop.f32.mrf.mxu0
        %v1529 = vadd.f32 %v1440, %v1528
        %v1530 = vpop.f32.mrf.mxu0
        %v1531 = vadd.f32 %v1442, %v1530
        %1532 = vmatmul.bf16.gmra.mxu0 %v802
        %v1533 = vpop.f32.mrf.mxu0
        %v1534 = vadd.f32 %v1445, %v1533
        %v1535 = vpop.f32.mrf.mxu0
        %v1536 = vadd.f32 %v1447, %v1535
        %1537 = vmatmul.bf16.gmra.mxu0 %v806
        %v1538 = vpop.f32.mrf.mxu0
        %v1539 = vadd.f32 %v1450, %v1538
        %v1540 = vpop.f32.mrf.mxu0
        %v1541 = vadd.f32 %v1452, %v1540
        %1542 = vmatmul.bf16.gmra.mxu0 %v810
        %v1543 = vpop.f32.mrf.mxu0
        %v1544 = vadd.f32 %v1455, %v1543
        %v1545 = vpop.f32.mrf.mxu0
        %v1546 = vadd.f32 %v1457, %v1545
        %1547 = vmatmul.bf16.gmra.mxu0 %v814
        %v1548 = vpop.f32.mrf.mxu0
        %v1549 = vadd.f32 %v1460, %v1548
        %v1550 = vpop.f32.mrf.mxu0
        %v1551 = vadd.f32 %v1462, %v1550
        %1552 = vmatmul.bf16.gmra.mxu0 %v818
        %v1553 = vpop.f32.mrf.mxu0
        %v1554 = vadd.f32 %v1465, %v1553
        %v1555 = vpop.f32.mrf.mxu0
        %v1556 = vadd.f32 %v1467, %v1555
        %1557 = vmatmul.bf16.gmra.mxu0 %v822
        %v1558 = vpop.f32.mrf.mxu0
        %v1559 = vadd.f32 %v1470, %v1558
        %v1560 = vpop.f32.mrf.mxu0
        %v1561 = vadd.f32 %v1472, %v1560
        %1562 = vdwg.mxu0
        %1563 = vmatpush.bf16.msra.mxu0 %v1094
        %1564 = vmatpush.bf16.msra.mxu0 %v1092
        %1565 = vmatpush.bf16.msra.mxu0 %v1090
        %1566 = vmatpush.bf16.msra.mxu0 %v1088
        %1567 = vmatpush.bf16.msra.mxu0 %v1086
        %1568 = vmatpush.bf16.msra.mxu0 %v1084
        %1569 = vmatpush.bf16.msra.mxu0 %v1082
        %1570 = vmatpush.bf16.msra.mxu0 %v1080
        %1571 = vmatmul.bf16.gmra.mxu0 %v759
        %v1572 = vpop.f32.mrf.mxu0
        %v1573 = vadd.f32 0.0, %v1572
        %v1574 = vpop.f32.mrf.mxu0
        %v1575 = vadd.f32 0.0, %v1574
        %1576 = vmatmul.bf16.gmra.mxu0 %v763
        %v1577 = vpop.f32.mrf.mxu0
        %v1578 = vadd.f32 0.0, %v1577
        %v1579 = vpop.f32.mrf.mxu0
        %v1580 = vadd.f32 0.0, %v1579
        %1581 = vmatmul.bf16.gmra.mxu0 %v767
        %v1582 = vpop.f32.mrf.mxu0
        %v1583 = vadd.f32 0.0, %v1582
        %v1584 = vpop.f32.mrf.mxu0
        %v1585 = vadd.f32 0.0, %v1584
        %1586 = vmatmul.bf16.gmra.mxu0 %v771
        %v1587 = vpop.f32.mrf.mxu0
        %v1588 = vadd.f32 0.0, %v1587
        %v1589 = vpop.f32.mrf.mxu0
        %v1590 = vadd.f32 0.0, %v1589
        %1591 = vmatmul.bf16.gmra.mxu0 %v775
        %v1592 = vpop.f32.mrf.mxu0
        %v1593 = vadd.f32 0.0, %v1592
        %v1594 = vpop.f32.mrf.mxu0
        %v1595 = vadd.f32 0.0, %v1594
        %1596 = vmatmul.bf16.gmra.mxu0 %v779
        %v1597 = vpop.f32.mrf.mxu0
        %v1598 = vadd.f32 0.0, %v1597
        %v1599 = vpop.f32.mrf.mxu0
        %v1600 = vadd.f32 0.0, %v1599
        %1601 = vmatmul.bf16.gmra.mxu0 %v783
        %v1602 = vpop.f32.mrf.mxu0
        %v1603 = vadd.f32 0.0, %v1602
        %v1604 = vpop.f32.mrf.mxu0
        %v1605 = vadd.f32 0.0, %v1604
        %1606 = vmatmul.bf16.gmra.mxu0 %v787
        %v1607 = vpop.f32.mrf.mxu0
        %v1608 = vadd.f32 0.0, %v1607
        %v1609 = vpop.f32.mrf.mxu0
        %v1610 = vadd.f32 0.0, %v1609
        %1611 = vmatmul.bf16.gmra.mxu0 %v791
        %v1612 = vpop.f32.mrf.mxu0
        %v1613 = vadd.f32 0.0, %v1612
        %v1614 = vpop.f32.mrf.mxu0
        %v1615 = vadd.f32 0.0, %v1614
        %1616 = vmatmul.bf16.gmra.mxu0 %v795
        %v1617 = vpop.f32.mrf.mxu0
        %v1618 = vadd.f32 0.0, %v1617
        %v1619 = vpop.f32.mrf.mxu0
        %v1620 = vadd.f32 0.0, %v1619
        %1621 = vmatmul.bf16.gmra.mxu0 %v799
        %v1622 = vpop.f32.mrf.mxu0
        %v1623 = vadd.f32 0.0, %v1622
        %v1624 = vpop.f32.mrf.mxu0
        %v1625 = vadd.f32 0.0, %v1624
        %1626 = vmatmul.bf16.gmra.mxu0 %v803
        %v1627 = vpop.f32.mrf.mxu0
        %v1628 = vadd.f32 0.0, %v1627
        %v1629 = vpop.f32.mrf.mxu0
        %v1630 = vadd.f32 0.0, %v1629
        %1631 = vmatmul.bf16.gmra.mxu0 %v807
        %v1632 = vpop.f32.mrf.mxu0
        %v1633 = vadd.f32 0.0, %v1632
        %v1634 = vpop.f32.mrf.mxu0
        %v1635 = vadd.f32 0.0, %v1634
        %1636 = vmatmul.bf16.gmra.mxu0 %v811
        %v1637 = vpop.f32.mrf.mxu0
        %v1638 = vadd.f32 0.0, %v1637
        %v1639 = vpop.f32.mrf.mxu0
        %v1640 = vadd.f32 0.0, %v1639
        %1641 = vmatmul.bf16.gmra.mxu0 %v815
        %v1642 = vpop.f32.mrf.mxu0
        %v1643 = vadd.f32 0.0, %v1642
        %v1644 = vpop.f32.mrf.mxu0
        %v1645 = vadd.f32 0.0, %v1644
        %1646 = vmatmul.bf16.gmra.mxu0 %v819
        %v1647 = vpop.f32.mrf.mxu0
        %v1648 = vadd.f32 0.0, %v1647
        %v1649 = vpop.f32.mrf.mxu0
        %v1650 = vadd.f32 0.0, %v1649
        %1651 = vdwg.mxu0
        %1652 = vmatpush.bf16.msra.mxu0 %v1110
        %1653 = vmatpush.bf16.msra.mxu0 %v1108
        %1654 = vmatpush.bf16.msra.mxu0 %v1106
        %1655 = vmatpush.bf16.msra.mxu0 %v1104
        %1656 = vmatpush.bf16.msra.mxu0 %v1102
        %1657 = vmatpush.bf16.msra.mxu0 %v1100
        %1658 = vmatpush.bf16.msra.mxu0 %v1098
        %1659 = vmatpush.bf16.msra.mxu0 %v1096
        %1660 = vmatmul.bf16.gmra.mxu0 %v760
        %v1661 = vpop.f32.mrf.mxu0
        %v1662 = vadd.f32 %v1573, %v1661
        %v1663 = vpop.f32.mrf.mxu0
        %v1664 = vadd.f32 %v1575, %v1663
        %1665 = vmatmul.bf16.gmra.mxu0 %v764
        %v1666 = vpop.f32.mrf.mxu0
        %v1667 = vadd.f32 %v1578, %v1666
        %v1668 = vpop.f32.mrf.mxu0
        %v1669 = vadd.f32 %v1580, %v1668
        %1670 = vmatmul.bf16.gmra.mxu0 %v768
        %v1671 = vpop.f32.mrf.mxu0
        %v1672 = vadd.f32 %v1583, %v1671
        %v1673 = vpop.f32.mrf.mxu0
        %v1674 = vadd.f32 %v1585, %v1673
        %1675 = vmatmul.bf16.gmra.mxu0 %v772
        %v1676 = vpop.f32.mrf.mxu0
        %v1677 = vadd.f32 %v1588, %v1676
        %v1678 = vpop.f32.mrf.mxu0
        %v1679 = vadd.f32 %v1590, %v1678
        %1680 = vmatmul.bf16.gmra.mxu0 %v776
        %v1681 = vpop.f32.mrf.mxu0
        %v1682 = vadd.f32 %v1593, %v1681
        %v1683 = vpop.f32.mrf.mxu0
        %v1684 = vadd.f32 %v1595, %v1683
        %1685 = vmatmul.bf16.gmra.mxu0 %v780
        %v1686 = vpop.f32.mrf.mxu0
        %v1687 = vadd.f32 %v1598, %v1686
        %v1688 = vpop.f32.mrf.mxu0
        %v1689 = vadd.f32 %v1600, %v1688
        %1690 = vmatmul.bf16.gmra.mxu0 %v784
        %v1691 = vpop.f32.mrf.mxu0
        %v1692 = vadd.f32 %v1603, %v1691
        %v1693 = vpop.f32.mrf.mxu0
        %v1694 = vadd.f32 %v1605, %v1693
        %1695 = vmatmul.bf16.gmra.mxu0 %v788
        %v1696 = vpop.f32.mrf.mxu0
        %v1697 = vadd.f32 %v1608, %v1696
        %v1698 = vpop.f32.mrf.mxu0
        %v1699 = vadd.f32 %v1610, %v1698
        %1700 = vmatmul.bf16.gmra.mxu0 %v792
        %v1701 = vpop.f32.mrf.mxu0
        %v1702 = vadd.f32 %v1613, %v1701
        %v1703 = vpop.f32.mrf.mxu0
        %v1704 = vadd.f32 %v1615, %v1703
        %1705 = vmatmul.bf16.gmra.mxu0 %v796
        %v1706 = vpop.f32.mrf.mxu0
        %v1707 = vadd.f32 %v1618, %v1706
        %v1708 = vpop.f32.mrf.mxu0
        %v1709 = vadd.f32 %v1620, %v1708
        %1710 = vmatmul.bf16.gmra.mxu0 %v800
        %v1711 = vpop.f32.mrf.mxu0
        %v1712 = vadd.f32 %v1623, %v1711
        %v1713 = vpop.f32.mrf.mxu0
        %v1714 = vadd.f32 %v1625, %v1713
        %1715 = vmatmul.bf16.gmra.mxu0 %v804
        %v1716 = vpop.f32.mrf.mxu0
        %v1717 = vadd.f32 %v1628, %v1716
        %v1718 = vpop.f32.mrf.mxu0
        %v1719 = vadd.f32 %v1630, %v1718
        %1720 = vmatmul.bf16.gmra.mxu0 %v808
        %v1721 = vpop.f32.mrf.mxu0
        %v1722 = vadd.f32 %v1633, %v1721
        %v1723 = vpop.f32.mrf.mxu0
        %v1724 = vadd.f32 %v1635, %v1723
        %1725 = vmatmul.bf16.gmra.mxu0 %v812
        %v1726 = vpop.f32.mrf.mxu0
        %v1727 = vadd.f32 %v1638, %v1726
        %v1728 = vpop.f32.mrf.mxu0
        %v1729 = vadd.f32 %v1640, %v1728
        %1730 = vmatmul.bf16.gmra.mxu0 %v816
        %v1731 = vpop.f32.mrf.mxu0
        %v1732 = vadd.f32 %v1643, %v1731
        %v1733 = vpop.f32.mrf.mxu0
        %v1734 = vadd.f32 %v1645, %v1733
        %1735 = vmatmul.bf16.gmra.mxu0 %v820
        %v1736 = vpop.f32.mrf.mxu0
        %v1737 = vadd.f32 %v1648, %v1736
        %v1738 = vpop.f32.mrf.mxu0
        %v1739 = vadd.f32 %v1650, %v1738
        %1740 = vdwg.mxu0
        %1741 = vmatpush.bf16.msra.mxu0 %v1126
        %1742 = vmatpush.bf16.msra.mxu0 %v1124
        %1743 = vmatpush.bf16.msra.mxu0 %v1122
        %1744 = vmatpush.bf16.msra.mxu0 %v1120
        %1745 = vmatpush.bf16.msra.mxu0 %v1118
        %1746 = vmatpush.bf16.msra.mxu0 %v1116
        %1747 = vmatpush.bf16.msra.mxu0 %v1114
        %1748 = vmatpush.bf16.msra.mxu0 %v1112
        %1749 = vmatmul.bf16.gmra.mxu0 %v761
        %v1750 = vpop.f32.mrf.mxu0
        %v1751 = vadd.f32 %v1662, %v1750
        %v1752 = vpop.f32.mrf.mxu0
        %v1753 = vadd.f32 %v1664, %v1752
        %1754 = vmatmul.bf16.gmra.mxu0 %v765
        %v1755 = vpop.f32.mrf.mxu0
        %v1756 = vadd.f32 %v1667, %v1755
        %v1757 = vpop.f32.mrf.mxu0
        %v1758 = vadd.f32 %v1669, %v1757
        %1759 = vmatmul.bf16.gmra.mxu0 %v769
        %v1760 = vpop.f32.mrf.mxu0
        %v1761 = vadd.f32 %v1672, %v1760
        %v1762 = vpop.f32.mrf.mxu0
        %v1763 = vadd.f32 %v1674, %v1762
        %1764 = vmatmul.bf16.gmra.mxu0 %v773
        %v1765 = vpop.f32.mrf.mxu0
        %v1766 = vadd.f32 %v1677, %v1765
        %v1767 = vpop.f32.mrf.mxu0
        %v1768 = vadd.f32 %v1679, %v1767
        %1769 = vmatmul.bf16.gmra.mxu0 %v777
        %v1770 = vpop.f32.mrf.mxu0
        %v1771 = vadd.f32 %v1682, %v1770
        %v1772 = vpop.f32.mrf.mxu0
        %v1773 = vadd.f32 %v1684, %v1772
        %1774 = vmatmul.bf16.gmra.mxu0 %v781
        %v1775 = vpop.f32.mrf.mxu0
        %v1776 = vadd.f32 %v1687, %v1775
        %v1777 = vpop.f32.mrf.mxu0
        %v1778 = vadd.f32 %v1689, %v1777
        %1779 = vmatmul.bf16.gmra.mxu0 %v785
        %v1780 = vpop.f32.mrf.mxu0
        %v1781 = vadd.f32 %v1692, %v1780
        %v1782 = vpop.f32.mrf.mxu0
        %v1783 = vadd.f32 %v1694, %v1782
        %1784 = vmatmul.bf16.gmra.mxu0 %v789
        %v1785 = vpop.f32.mrf.mxu0
        %v1786 = vadd.f32 %v1697, %v1785
        %v1787 = vpop.f32.mrf.mxu0
        %v1788 = vadd.f32 %v1699, %v1787
        %1789 = vmatmul.bf16.gmra.mxu0 %v793
        %v1790 = vpop.f32.mrf.mxu0
        %v1791 = vadd.f32 %v1702, %v1790
        %v1792 = vpop.f32.mrf.mxu0
        %v1793 = vadd.f32 %v1704, %v1792
        %1794 = vmatmul.bf16.gmra.mxu0 %v797
        %v1795 = vpop.f32.mrf.mxu0
        %v1796 = vadd.f32 %v1707, %v1795
        %v1797 = vpop.f32.mrf.mxu0
        %v1798 = vadd.f32 %v1709, %v1797
        %1799 = vmatmul.bf16.gmra.mxu0 %v801
        %v1800 = vpop.f32.mrf.mxu0
        %v1801 = vadd.f32 %v1712, %v1800
        %v1802 = vpop.f32.mrf.mxu0
        %v1803 = vadd.f32 %v1714, %v1802
        %1804 = vmatmul.bf16.gmra.mxu0 %v805
        %v1805 = vpop.f32.mrf.mxu0
        %v1806 = vadd.f32 %v1717, %v1805
        %v1807 = vpop.f32.mrf.mxu0
        %v1808 = vadd.f32 %v1719, %v1807
        %1809 = vmatmul.bf16.gmra.mxu0 %v809
        %v1810 = vpop.f32.mrf.mxu0
        %v1811 = vadd.f32 %v1722, %v1810
        %v1812 = vpop.f32.mrf.mxu0
        %v1813 = vadd.f32 %v1724, %v1812
        %1814 = vmatmul.bf16.gmra.mxu0 %v813
        %v1815 = vpop.f32.mrf.mxu0
        %v1816 = vadd.f32 %v1727, %v1815
        %v1817 = vpop.f32.mrf.mxu0
        %v1818 = vadd.f32 %v1729, %v1817
        %1819 = vmatmul.bf16.gmra.mxu0 %v817
        %v1820 = vpop.f32.mrf.mxu0
        %v1821 = vadd.f32 %v1732, %v1820
        %v1822 = vpop.f32.mrf.mxu0
        %v1823 = vadd.f32 %v1734, %v1822
        %1824 = vmatmul.bf16.gmra.mxu0 %v821
        %v1825 = vpop.f32.mrf.mxu0
        %v1826 = vadd.f32 %v1737, %v1825
        %v1827 = vpop.f32.mrf.mxu0
        %v1828 = vadd.f32 %v1739, %v1827
        %1829 = vdwg.mxu0
        %1830 = vmatpush.bf16.msra.mxu0 %v1142
        %1831 = vmatpush.bf16.msra.mxu0 %v1140
        %1832 = vmatpush.bf16.msra.mxu0 %v1138
        %1833 = vmatpush.bf16.msra.mxu0 %v1136
        %1834 = vmatpush.bf16.msra.mxu0 %v1134
        %1835 = vmatpush.bf16.msra.mxu0 %v1132
        %1836 = vmatpush.bf16.msra.mxu0 %v1130
        %1837 = vmatpush.bf16.msra.mxu0 %v1128
        %1838 = vmatmul.bf16.gmra.mxu0 %v762
        %v1839 = vpop.f32.mrf.mxu0
        %v1840 = vadd.f32 %v1751, %v1839
        %v1841 = vpop.f32.mrf.mxu0
        %v1842 = vadd.f32 %v1753, %v1841
        %1843 = vmatmul.bf16.gmra.mxu0 %v766
        %v1844 = vpop.f32.mrf.mxu0
        %v1845 = vadd.f32 %v1756, %v1844
        %v1846 = vpop.f32.mrf.mxu0
        %v1847 = vadd.f32 %v1758, %v1846
        %1848 = vmatmul.bf16.gmra.mxu0 %v770
        %v1849 = vpop.f32.mrf.mxu0
        %v1850 = vadd.f32 %v1761, %v1849
        %v1851 = vpop.f32.mrf.mxu0
        %v1852 = vadd.f32 %v1763, %v1851
        %1853 = vmatmul.bf16.gmra.mxu0 %v774
        %v1854 = vpop.f32.mrf.mxu0
        %v1855 = vadd.f32 %v1766, %v1854
        %v1856 = vpop.f32.mrf.mxu0
        %v1857 = vadd.f32 %v1768, %v1856
        %1858 = vmatmul.bf16.gmra.mxu0 %v778
        %v1859 = vpop.f32.mrf.mxu0
        %v1860 = vadd.f32 %v1771, %v1859
        %v1861 = vpop.f32.mrf.mxu0
        %v1862 = vadd.f32 %v1773, %v1861
        %1863 = vmatmul.bf16.gmra.mxu0 %v782
        %v1864 = vpop.f32.mrf.mxu0
        %v1865 = vadd.f32 %v1776, %v1864
        %v1866 = vpop.f32.mrf.mxu0
        %v1867 = vadd.f32 %v1778, %v1866
        %1868 = vmatmul.bf16.gmra.mxu0 %v786
        %v1869 = vpop.f32.mrf.mxu0
        %v1870 = vadd.f32 %v1781, %v1869
        %v1871 = vpop.f32.mrf.mxu0
        %v1872 = vadd.f32 %v1783, %v1871
        %1873 = vmatmul.bf16.gmra.mxu0 %v790
        %v1874 = vpop.f32.mrf.mxu0
        %v1875 = vadd.f32 %v1786, %v1874
        %v1876 = vpop.f32.mrf.mxu0
        %v1877 = vadd.f32 %v1788, %v1876
        %1878 = vmatmul.bf16.gmra.mxu0 %v794
        %v1879 = vpop.f32.mrf.mxu0
        %v1880 = vadd.f32 %v1791, %v1879
        %v1881 = vpop.f32.mrf.mxu0
        %v1882 = vadd.f32 %v1793, %v1881
        %1883 = vmatmul.bf16.gmra.mxu0 %v798
        %v1884 = vpop.f32.mrf.mxu0
        %v1885 = vadd.f32 %v1796, %v1884
        %v1886 = vpop.f32.mrf.mxu0
        %v1887 = vadd.f32 %v1798, %v1886
        %1888 = vmatmul.bf16.gmra.mxu0 %v802
        %v1889 = vpop.f32.mrf.mxu0
        %v1890 = vadd.f32 %v1801, %v1889
        %v1891 = vpop.f32.mrf.mxu0
        %v1892 = vadd.f32 %v1803, %v1891
        %1893 = vmatmul.bf16.gmra.mxu0 %v806
        %v1894 = vpop.f32.mrf.mxu0
        %v1895 = vadd.f32 %v1806, %v1894
        %v1896 = vpop.f32.mrf.mxu0
        %v1897 = vadd.f32 %v1808, %v1896
        %1898 = vmatmul.bf16.gmra.mxu0 %v810
        %v1899 = vpop.f32.mrf.mxu0
        %v1900 = vadd.f32 %v1811, %v1899
        %v1901 = vpop.f32.mrf.mxu0
        %v1902 = vadd.f32 %v1813, %v1901
        %1903 = vmatmul.bf16.gmra.mxu0 %v814
        %v1904 = vpop.f32.mrf.mxu0
        %v1905 = vadd.f32 %v1816, %v1904
        %v1906 = vpop.f32.mrf.mxu0
        %v1907 = vadd.f32 %v1818, %v1906
        %1908 = vmatmul.bf16.gmra.mxu0 %v818
        %v1909 = vpop.f32.mrf.mxu0
        %v1910 = vadd.f32 %v1821, %v1909
        %v1911 = vpop.f32.mrf.mxu0
        %v1912 = vadd.f32 %v1823, %v1911
        %1913 = vmatmul.bf16.gmra.mxu0 %v822
        %v1914 = vpop.f32.mrf.mxu0
        %v1915 = vadd.f32 %v1826, %v1914
        %v1916 = vpop.f32.mrf.mxu0
        %v1917 = vadd.f32 %v1828, %v1916
        %1918 = vdwg.mxu0
        %v1919 = vadd.f32 %v375, %v1484
        %v1920 = vadd.f32 %v376, %v1840
        %v1921 = vadd.f32 %v377, %v1486
        %v1922 = vadd.f32 %v378, %v1842
        %v1923 = vadd.f32 %v379, %v1489
        %v1924 = vadd.f32 %v380, %v1845
        %v1925 = vadd.f32 %v381, %v1491
        %v1926 = vadd.f32 %v382, %v1847
        %v1927 = vadd.f32 %v383, %v1494
        %v1928 = vadd.f32 %v384, %v1850
        %v1929 = vadd.f32 %v385, %v1496
        %v1930 = vadd.f32 %v386, %v1852
        %v1931 = vadd.f32 %v387, %v1499
        %v1932 = vadd.f32 %v388, %v1855
        %v1933 = vadd.f32 %v389, %v1501
        %v1934 = vadd.f32 %v390, %v1857
        %v1935 = vadd.f32 %v391, %v1504
        %v1936 = vadd.f32 %v392, %v1860
        %v1937 = vadd.f32 %v393, %v1506
        %v1938 = vadd.f32 %v394, %v1862
        %v1939 = vadd.f32 %v395, %v1509
        %v1940 = vadd.f32 %v396, %v1865
        %v1941 = vadd.f32 %v397, %v1511
        %v1942 = vadd.f32 %v398, %v1867
        %v1943 = vadd.f32 %v399, %v1514
        %v1944 = vadd.f32 %v400, %v1870
        %v1945 = vadd.f32 %v401, %v1516
        %v1946 = vadd.f32 %v402, %v1872
        %v1947 = vadd.f32 %v403, %v1519
        %v1948 = vadd.f32 %v404, %v1875
        %v1949 = vadd.f32 %v405, %v1521
        %v1950 = vadd.f32 %v406, %v1877
        %v1951 = vadd.f32 %v407, %v1524
        %v1952 = vadd.f32 %v408, %v1880
        %v1953 = vadd.f32 %v409, %v1526
        %v1954 = vadd.f32 %v410, %v1882
        %v1955 = vadd.f32 %v411, %v1529
        %v1956 = vadd.f32 %v412, %v1885
        %v1957 = vadd.f32 %v413, %v1531
        %v1958 = vadd.f32 %v414, %v1887
        %v1959 = vadd.f32 %v415, %v1534
        %v1960 = vadd.f32 %v416, %v1890
        %v1961 = vadd.f32 %v417, %v1536
        %v1962 = vadd.f32 %v418, %v1892
        %v1963 = vadd.f32 %v419, %v1539
        %v1964 = vadd.f32 %v420, %v1895
        %v1965 = vadd.f32 %v421, %v1541
        %v1966 = vadd.f32 %v422, %v1897
        %v1967 = vadd.f32 %v423, %v1544
        %v1968 = vadd.f32 %v424, %v1900
        %v1969 = vadd.f32 %v425, %v1546
        %v1970 = vadd.f32 %v426, %v1902
        %v1971 = vadd.f32 %v427, %v1549
        %v1972 = vadd.f32 %v428, %v1905
        %v1973 = vadd.f32 %v429, %v1551
        %v1974 = vadd.f32 %v430, %v1907
        %v1975 = vadd.f32 %v431, %v1554
        %v1976 = vadd.f32 %v432, %v1910
        %v1977 = vadd.f32 %v433, %v1556
        %v1978 = vadd.f32 %v434, %v1912
        %v1979 = vadd.f32 %v435, %v1559
        %v1980 = vadd.f32 %v436, %v1915
        %v1981 = vadd.f32 %v437, %v1561
        %v1982 = vadd.f32 %v438, %v1917
        %1983 = vst [vmem:[#allocation2] sm:$0xff] %v1919
        %1984 = vst [vmem:[#allocation2 + $0x8] sm:$0xff] %v1920
        %1985 = vst [vmem:[#allocation2 + $0x10] sm:$0xff] %v1921
        %1986 = vst [vmem:[#allocation2 + $0x18] sm:$0xff] %v1922
        %1987 = vst [vmem:[#allocation2 + $0x20] sm:$0xff] %v1923
        %1988 = vst [vmem:[#allocation2 + $0x28] sm:$0xff] %v1924
        %1989 = vst [vmem:[#allocation2 + $0x30] sm:$0xff] %v1925
        %1990 = vst [vmem:[#allocation2 + $0x38] sm:$0xff] %v1926
        %1991 = vst [vmem:[#allocation2 + $0x40] sm:$0xff] %v1927
        %1992 = vst [vmem:[#allocation2 + $0x48] sm:$0xff] %v1928
        %1993 = vst [vmem:[#allocation2 + $0x50] sm:$0xff] %v1929
        %1994 = vst [vmem:[#allocation2 + $0x58] sm:$0xff] %v1930
        %1995 = vst [vmem:[#allocation2 + $0x60] sm:$0xff] %v1931
        %1996 = vst [vmem:[#allocation2 + $0x68] sm:$0xff] %v1932
        %1997 = vst [vmem:[#allocation2 + $0x70] sm:$0xff] %v1933
        %1998 = vst [vmem:[#allocation2 + $0x78] sm:$0xff] %v1934
        %1999 = vst [vmem:[#allocation2 + $0x80] sm:$0xff] %v1935
        %2000 = vst [vmem:[#allocation2 + $0x88] sm:$0xff] %v1936
        %2001 = vst [vmem:[#allocation2 + $0x90] sm:$0xff] %v1937
        %2002 = vst [vmem:[#allocation2 + $0x98] sm:$0xff] %v1938
        %2003 = vst [vmem:[#allocation2 + $0xa0] sm:$0xff] %v1939
        %2004 = vst [vmem:[#allocation2 + $0xa8] sm:$0xff] %v1940
        %2005 = vst [vmem:[#allocation2 + $0xb0] sm:$0xff] %v1941
        %2006 = vst [vmem:[#allocation2 + $0xb8] sm:$0xff] %v1942
        %2007 = vst [vmem:[#allocation2 + $0xc0] sm:$0xff] %v1943
        %2008 = vst [vmem:[#allocation2 + $0xc8] sm:$0xff] %v1944
        %2009 = vst [vmem:[#allocation2 + $0xd0] sm:$0xff] %v1945
        %2010 = vst [vmem:[#allocation2 + $0xd8] sm:$0xff] %v1946
        %2011 = vst [vmem:[#allocation2 + $0xe0] sm:$0xff] %v1947
        %2012 = vst [vmem:[#allocation2 + $0xe8] sm:$0xff] %v1948
        %2013 = vst [vmem:[#allocation2 + $0xf0] sm:$0xff] %v1949
        %2014 = vst [vmem:[#allocation2 + $0xf8] sm:$0xff] %v1950
        %2015 = vst [vmem:[#allocation2 + $0x100] sm:$0xff] %v1951
        %2016 = vst [vmem:[#allocation2 + $0x108] sm:$0xff] %v1952
        %2017 = vst [vmem:[#allocation2 + $0x110] sm:$0xff] %v1953
        %2018 = vst [vmem:[#allocation2 + $0x118] sm:$0xff] %v1954
        %2019 = vst [vmem:[#allocation2 + $0x120] sm:$0xff] %v1955
        %2020 = vst [vmem:[#allocation2 + $0x128] sm:$0xff] %v1956
        %2021 = vst [vmem:[#allocation2 + $0x130] sm:$0xff] %v1957
        %2022 = vst [vmem:[#allocation2 + $0x138] sm:$0xff] %v1958
        %2023 = vst [vmem:[#allocation2 + $0x140] sm:$0xff] %v1959
        %2024 = vst [vmem:[#allocation2 + $0x148] sm:$0xff] %v1960
        %2025 = vst [vmem:[#allocation2 + $0x150] sm:$0xff] %v1961
        %2026 = vst [vmem:[#allocation2 + $0x158] sm:$0xff] %v1962
        %2027 = vst [vmem:[#allocation2 + $0x160] sm:$0xff] %v1963
        %2028 = vst [vmem:[#allocation2 + $0x168] sm:$0xff] %v1964
        %2029 = vst [vmem:[#allocation2 + $0x170] sm:$0xff] %v1965
        %2030 = vst [vmem:[#allocation2 + $0x178] sm:$0xff] %v1966
        %2031 = vst [vmem:[#allocation2 + $0x180] sm:$0xff] %v1967
        %2032 = vst [vmem:[#allocation2 + $0x188] sm:$0xff] %v1968
        %2033 = vst [vmem:[#allocation2 + $0x190] sm:$0xff] %v1969
        %2034 = vst [vmem:[#allocation2 + $0x198] sm:$0xff] %v1970
        %2035 = vst [vmem:[#allocation2 + $0x1a0] sm:$0xff] %v1971
        %2036 = vst [vmem:[#allocation2 + $0x1a8] sm:$0xff] %v1972
        %2037 = vst [vmem:[#allocation2 + $0x1b0] sm:$0xff] %v1973
        %2038 = vst [vmem:[#allocation2 + $0x1b8] sm:$0xff] %v1974
        %2039 = vst [vmem:[#allocation2 + $0x1c0] sm:$0xff] %v1975
        %2040 = vst [vmem:[#allocation2 + $0x1c8] sm:$0xff] %v1976
        %2041 = vst [vmem:[#allocation2 + $0x1d0] sm:$0xff] %v1977
        %2042 = vst [vmem:[#allocation2 + $0x1d8] sm:$0xff] %v1978
        %2043 = vst [vmem:[#allocation2 + $0x1e0] sm:$0xff] %v1979
        %2044 = vst [vmem:[#allocation2 + $0x1e8] sm:$0xff] %v1980
        %2045 = vst [vmem:[#allocation2 + $0x1f0] sm:$0xff] %v1981
        %2046 = vst [vmem:[#allocation2 + $0x1f8] sm:$0xff] %v1982
        %p2047 = scmp.eq.s32.totalorder %s30, 1
        // Predicated region
        $region49: #{tpu_custom_call.1} parent=31 // pred_check
          %p2048 = pneg %p2047
        $region50: #{tpu_custom_call.1} parent=31 // pred_check_branch
          %2050 = sbr.rel (%p2048) target = $region52
        $region51: #{tpu_custom_call.1} parent=31 // pred_region
          %v2051 = vld [vmem:[#allocation2] sm:$0xff]
          %v2052 = vld [vmem:[#allocation2 + $0x8] sm:$0xff]
          %v2053 = vld [vmem:[#allocation2 + $0x10] sm:$0xff]
          %v2054 = vld [vmem:[#allocation2 + $0x18] sm:$0xff]
          %v2055 = vld [vmem:[#allocation2 + $0x20] sm:$0xff]
          %v2056 = vld [vmem:[#allocation2 + $0x28] sm:$0xff]
          %v2057 = vld [vmem:[#allocation2 + $0x30] sm:$0xff]
          %v2058 = vld [vmem:[#allocation2 + $0x38] sm:$0xff]
          %v2059 = vld [vmem:[#allocation2 + $0x40] sm:$0xff]
          %v2060 = vld [vmem:[#allocation2 + $0x48] sm:$0xff]
          %v2061 = vld [vmem:[#allocation2 + $0x50] sm:$0xff]
          %v2062 = vld [vmem:[#allocation2 + $0x58] sm:$0xff]
          %v2063 = vld [vmem:[#allocation2 + $0x60] sm:$0xff]
          %v2064 = vld [vmem:[#allocation2 + $0x68] sm:$0xff]
          %v2065 = vld [vmem:[#allocation2 + $0x70] sm:$0xff]
          %v2066 = vld [vmem:[#allocation2 + $0x78] sm:$0xff]
          %v2067 = vld [vmem:[#allocation2 + $0x80] sm:$0xff]
          %v2068 = vld [vmem:[#allocation2 + $0x88] sm:$0xff]
          %v2069 = vld [vmem:[#allocation2 + $0x90] sm:$0xff]
          %v2070 = vld [vmem:[#allocation2 + $0x98] sm:$0xff]
          %v2071 = vld [vmem:[#allocation2 + $0xa0] sm:$0xff]
          %v2072 = vld [vmem:[#allocation2 + $0xa8] sm:$0xff]
          %v2073 = vld [vmem:[#allocation2 + $0xb0] sm:$0xff]
          %v2074 = vld [vmem:[#allocation2 + $0xb8] sm:$0xff]
          %v2075 = vld [vmem:[#allocation2 + $0xc0] sm:$0xff]
          %v2076 = vld [vmem:[#allocation2 + $0xc8] sm:$0xff]
          %v2077 = vld [vmem:[#allocation2 + $0xd0] sm:$0xff]
          %v2078 = vld [vmem:[#allocation2 + $0xd8] sm:$0xff]
          %v2079 = vld [vmem:[#allocation2 + $0xe0] sm:$0xff]
          %v2080 = vld [vmem:[#allocation2 + $0xe8] sm:$0xff]
          %v2081 = vld [vmem:[#allocation2 + $0xf0] sm:$0xff]
          %v2082 = vld [vmem:[#allocation2 + $0xf8] sm:$0xff]
          %v2083 = vld [vmem:[#allocation2 + $0x100] sm:$0xff]
          %v2084 = vld [vmem:[#allocation2 + $0x108] sm:$0xff]
          %v2085 = vld [vmem:[#allocation2 + $0x110] sm:$0xff]
          %v2086 = vld [vmem:[#allocation2 + $0x118] sm:$0xff]
          %v2087 = vld [vmem:[#allocation2 + $0x120] sm:$0xff]
          %v2088 = vld [vmem:[#allocation2 + $0x128] sm:$0xff]
          %v2089 = vld [vmem:[#allocation2 + $0x130] sm:$0xff]
          %v2090 = vld [vmem:[#allocation2 + $0x138] sm:$0xff]
          %v2091 = vld [vmem:[#allocation2 + $0x140] sm:$0xff]
          %v2092 = vld [vmem:[#allocation2 + $0x148] sm:$0xff]
          %v2093 = vld [vmem:[#allocation2 + $0x150] sm:$0xff]
          %v2094 = vld [vmem:[#allocation2 + $0x158] sm:$0xff]
          %v2095 = vld [vmem:[#allocation2 + $0x160] sm:$0xff]
          %v2096 = vld [vmem:[#allocation2 + $0x168] sm:$0xff]
          %v2097 = vld [vmem:[#allocation2 + $0x170] sm:$0xff]
          %v2098 = vld [vmem:[#allocation2 + $0x178] sm:$0xff]
          %v2099 = vld [vmem:[#allocation2 + $0x180] sm:$0xff]
          %v2100 = vld [vmem:[#allocation2 + $0x188] sm:$0xff]
          %v2101 = vld [vmem:[#allocation2 + $0x190] sm:$0xff]
          %v2102 = vld [vmem:[#allocation2 + $0x198] sm:$0xff]
          %v2103 = vld [vmem:[#allocation2 + $0x1a0] sm:$0xff]
          %v2104 = vld [vmem:[#allocation2 + $0x1a8] sm:$0xff]
          %v2105 = vld [vmem:[#allocation2 + $0x1b0] sm:$0xff]
          %v2106 = vld [vmem:[#allocation2 + $0x1b8] sm:$0xff]
          %v2107 = vld [vmem:[#allocation2 + $0x1c0] sm:$0xff]
          %v2108 = vld [vmem:[#allocation2 + $0x1c8] sm:$0xff]
          %v2109 = vld [vmem:[#allocation2 + $0x1d0] sm:$0xff]
          %v2110 = vld [vmem:[#allocation2 + $0x1d8] sm:$0xff]
          %v2111 = vld [vmem:[#allocation2 + $0x1e0] sm:$0xff]
          %v2112 = vld [vmem:[#allocation2 + $0x1e8] sm:$0xff]
          %v2113 = vld [vmem:[#allocation2 + $0x1f0] sm:$0xff]
          %v2114 = vld [vmem:[#allocation2 + $0x1f8] sm:$0xff]
          %v2115 = vld [vmem:[%s266] sm:$0x3]
          %v2117 = vperm.slane %v2115, 0
          %v2118 = vperm.slane %v2115, 1
          %v2121 = vadd.f32 %v2051, %v2117
          %v2122 = vadd.f32 %v2052, %v2118
          %v2123 = vadd.f32 %v2053, %v2117
          %v2124 = vadd.f32 %v2054, %v2118
          %v2125 = vadd.f32 %v2055, %v2117
          %v2126 = vadd.f32 %v2056, %v2118
          %v2127 = vadd.f32 %v2057, %v2117
          %v2128 = vadd.f32 %v2058, %v2118
          %v2129 = vadd.f32 %v2059, %v2117
          %v2130 = vadd.f32 %v2060, %v2118
          %v2131 = vadd.f32 %v2061, %v2117
          %v2132 = vadd.f32 %v2062, %v2118
          %v2133 = vadd.f32 %v2063, %v2117
          %v2134 = vadd.f32 %v2064, %v2118
          %v2135 = vadd.f32 %v2065, %v2117
          %v2136 = vadd.f32 %v2066, %v2118
          %v2137 = vadd.f32 %v2067, %v2117
          %v2138 = vadd.f32 %v2068, %v2118
          %v2139 = vadd.f32 %v2069, %v2117
          %v2140 = vadd.f32 %v2070, %v2118
          %v2141 = vadd.f32 %v2071, %v2117
          %v2142 = vadd.f32 %v2072, %v2118
          %v2143 = vadd.f32 %v2073, %v2117
          %v2144 = vadd.f32 %v2074, %v2118
          %v2145 = vadd.f32 %v2075, %v2117
          %v2146 = vadd.f32 %v2076, %v2118
          %v2147 = vadd.f32 %v2077, %v2117
          %v2148 = vadd.f32 %v2078, %v2118
          %v2149 = vadd.f32 %v2079, %v2117
          %v2150 = vadd.f32 %v2080, %v2118
          %v2151 = vadd.f32 %v2081, %v2117
          %v2152 = vadd.f32 %v2082, %v2118
          %v2153 = vadd.f32 %v2083, %v2117
          %v2154 = vadd.f32 %v2084, %v2118
          %v2155 = vadd.f32 %v2085, %v2117
          %v2156 = vadd.f32 %v2086, %v2118
          %v2157 = vadd.f32 %v2087, %v2117
          %v2158 = vadd.f32 %v2088, %v2118
          %v2159 = vadd.f32 %v2089, %v2117
          %v2160 = vadd.f32 %v2090, %v2118
          %v2161 = vadd.f32 %v2091, %v2117
          %v2162 = vadd.f32 %v2092, %v2118
          %v2163 = vadd.f32 %v2093, %v2117
          %v2164 = vadd.f32 %v2094, %v2118
          %v2165 = vadd.f32 %v2095, %v2117
          %v2166 = vadd.f32 %v2096, %v2118
          %v2167 = vadd.f32 %v2097, %v2117
          %v2168 = vadd.f32 %v2098, %v2118
          %v2169 = vadd.f32 %v2099, %v2117
          %v2170 = vadd.f32 %v2100, %v2118
          %v2171 = vadd.f32 %v2101, %v2117
          %v2172 = vadd.f32 %v2102, %v2118
          %v2173 = vadd.f32 %v2103, %v2117
          %v2174 = vadd.f32 %v2104, %v2118
          %v2175 = vadd.f32 %v2105, %v2117
          %v2176 = vadd.f32 %v2106, %v2118
          %v2177 = vadd.f32 %v2107, %v2117
          %v2178 = vadd.f32 %v2108, %v2118
          %v2179 = vadd.f32 %v2109, %v2117
          %v2180 = vadd.f32 %v2110, %v2118
          %v2181 = vadd.f32 %v2111, %v2117
          %v2182 = vadd.f32 %v2112, %v2118
          %v2183 = vadd.f32 %v2113, %v2117
          %v2184 = vadd.f32 %v2114, %v2118
          %2185 = vst [vmem:[%s299] sm:$0xff] %v2121
          %2186 = vst [vmem:[%s299 + $0x8] sm:$0xff] %v2122
          %2187 = vst [vmem:[%s299 + $0x10] sm:$0xff] %v2123
          %2188 = vst [vmem:[%s299 + $0x18] sm:$0xff] %v2124
          %2189 = vst [vmem:[%s299 + $0x20] sm:$0xff] %v2125
          %2190 = vst [vmem:[%s299 + $0x28] sm:$0xff] %v2126
          %2191 = vst [vmem:[%s299 + $0x30] sm:$0xff] %v2127
          %2192 = vst [vmem:[%s299 + $0x38] sm:$0xff] %v2128
          %2193 = vst [vmem:[%s299 + $0x40] sm:$0xff] %v2129
          %2194 = vst [vmem:[%s299 + $0x48] sm:$0xff] %v2130
          %2195 = vst [vmem:[%s299 + $0x50] sm:$0xff] %v2131
          %2196 = vst [vmem:[%s299 + $0x58] sm:$0xff] %v2132
          %2197 = vst [vmem:[%s299 + $0x60] sm:$0xff] %v2133
          %2198 = vst [vmem:[%s299 + $0x68] sm:$0xff] %v2134
          %2199 = vst [vmem:[%s299 + $0x70] sm:$0xff] %v2135
          %2200 = vst [vmem:[%s299 + $0x78] sm:$0xff] %v2136
          %2201 = vst [vmem:[%s299 + $0x80] sm:$0xff] %v2137
          %2202 = vst [vmem:[%s299 + $0x88] sm:$0xff] %v2138
          %2203 = vst [vmem:[%s299 + $0x90] sm:$0xff] %v2139
          %2204 = vst [vmem:[%s299 + $0x98] sm:$0xff] %v2140
          %2205 = vst [vmem:[%s299 + $0xa0] sm:$0xff] %v2141
          %2206 = vst [vmem:[%s299 + $0xa8] sm:$0xff] %v2142
          %2207 = vst [vmem:[%s299 + $0xb0] sm:$0xff] %v2143
          %2208 = vst [vmem:[%s299 + $0xb8] sm:$0xff] %v2144
          %2209 = vst [vmem:[%s299 + $0xc0] sm:$0xff] %v2145
          %2210 = vst [vmem:[%s299 + $0xc8] sm:$0xff] %v2146
          %2211 = vst [vmem:[%s299 + $0xd0] sm:$0xff] %v2147
          %2212 = vst [vmem:[%s299 + $0xd8] sm:$0xff] %v2148
          %2213 = vst [vmem:[%s299 + $0xe0] sm:$0xff] %v2149
          %2214 = vst [vmem:[%s299 + $0xe8] sm:$0xff] %v2150
          %2215 = vst [vmem:[%s299 + $0xf0] sm:$0xff] %v2151
          %2216 = vst [vmem:[%s299 + $0xf8] sm:$0xff] %v2152
          %2217 = vst [vmem:[%s299 + $0x100] sm:$0xff] %v2153
          %2218 = vst [vmem:[%s299 + $0x108] sm:$0xff] %v2154
          %2219 = vst [vmem:[%s299 + $0x110] sm:$0xff] %v2155
          %2220 = vst [vmem:[%s299 + $0x118] sm:$0xff] %v2156
          %2221 = vst [vmem:[%s299 + $0x120] sm:$0xff] %v2157
          %2222 = vst [vmem:[%s299 + $0x128] sm:$0xff] %v2158
          %2223 = vst [vmem:[%s299 + $0x130] sm:$0xff] %v2159
          %2224 = vst [vmem:[%s299 + $0x138] sm:$0xff] %v2160
          %2225 = vst [vmem:[%s299 + $0x140] sm:$0xff] %v2161
          %2226 = vst [vmem:[%s299 + $0x148] sm:$0xff] %v2162
          %2227 = vst [vmem:[%s299 + $0x150] sm:$0xff] %v2163
          %2228 = vst [vmem:[%s299 + $0x158] sm:$0xff] %v2164
          %2229 = vst [vmem:[%s299 + $0x160] sm:$0xff] %v2165
          %2230 = vst [vmem:[%s299 + $0x168] sm:$0xff] %v2166
          %2231 = vst [vmem:[%s299 + $0x170] sm:$0xff] %v2167
          %2232 = vst [vmem:[%s299 + $0x178] sm:$0xff] %v2168
          %2233 = vst [vmem:[%s299 + $0x180] sm:$0xff] %v2169
          %2234 = vst [vmem:[%s299 + $0x188] sm:$0xff] %v2170
          %2235 = vst [vmem:[%s299 + $0x190] sm:$0xff] %v2171
          %2236 = vst [vmem:[%s299 + $0x198] sm:$0xff] %v2172
          %2237 = vst [vmem:[%s299 + $0x1a0] sm:$0xff] %v2173
          %2238 = vst [vmem:[%s299 + $0x1a8] sm:$0xff] %v2174
          %2239 = vst [vmem:[%s299 + $0x1b0] sm:$0xff] %v2175
          %2240 = vst [vmem:[%s299 + $0x1b8] sm:$0xff] %v2176
          %2241 = vst [vmem:[%s299 + $0x1c0] sm:$0xff] %v2177
          %2242 = vst [vmem:[%s299 + $0x1c8] sm:$0xff] %v2178
          %2243 = vst [vmem:[%s299 + $0x1d0] sm:$0xff] %v2179
          %2244 = vst [vmem:[%s299 + $0x1d8] sm:$0xff] %v2180
          %2245 = vst [vmem:[%s299 + $0x1e0] sm:$0xff] %v2181
          %2246 = vst [vmem:[%s299 + $0x1e8] sm:$0xff] %v2182
          %2247 = vst [vmem:[%s299 + $0x1f0] sm:$0xff] %v2183
          %2248 = vst [vmem:[%s299 + $0x1f8] sm:$0xff] %v2184
        $region52: #{tpu_custom_call.1} parent=31 // pred_fallthru
          _
        %s2249 = sand.u32 %s134, 1
        %s2250 = scalar_lea.sflag [#allocation5], %s2249
        %s2251 = sand.u32 %s134, 1
        %s2252 = smul.addr %s2251, 512
        %s2253 = scalar_lea.vmem [#allocation9], %s2252
        // Predicated region
        $region53: #{tpu_custom_call.1} parent=31 // pred_check
          %p2254 = pneg %p144
        $region54: #{tpu_custom_call.1} parent=31 // pred_check_branch
          %2256 = sbr.rel (%p2254) target = $region56
        $region55: #{tpu_custom_call.1} parent=31 // pred_region
          %s2257 = smul.u32 32, %s28
          %s2258 = smul.u32 2, %s29
          %2260 = vsyncadd %s2250, 0
          %s2261 = smul.addr %s2257, 4
          %s2262 = sadd.s32 %s2258, %s2261
          %s2263 = smul.addr %s2262, 8
          %s2264 = scalar_lea.hbm %s3, %s2263
          %s2265 = sshll.u32 %s2253, 4
          %s2266 = int_to_ptr.vmem [resolvable:$true] %s2265
          %s2267 = sshll.u32 %s2264, 4
          %s2268 = int_to_ptr.hbm [resolvable:$true] %s2267
          %2273 = dma.vmem_to_hbm [thread:$0]  %s2266, 8192, %s2268, %s2250, 256, 512, 16
        $region56: #{tpu_custom_call.1} parent=31 // pred_fallthru
          _
      $region32: #{tpu_custom_call.1} parent=5 // pred_fallthru
        _
      %p2274 = scmp.le.s32.totalorder 2, %s18
      // Predicated region
      $region57: #{tpu_custom_call.1} parent=5 // pred_check
        %p2275 = pneg %p2274
      $region58: #{tpu_custom_call.1} parent=5 // pred_check_branch
        %2277 = sbr.rel (%p2275) target = $region60
      $region59: #{tpu_custom_call.1} parent=5 // pred_region
        %s2278 = ssub.s32 %s18, 2
        // Predicated region
        $region61: #{tpu_custom_call.1} parent=59 // pred_check
          %p2279 = pneg %p150
        $region62: #{tpu_custom_call.1} parent=59 // pred_check_branch
          %2281 = sbr.rel (%p2279) target = $region64
        $region63: #{tpu_custom_call.1} parent=59 // pred_region
          %s2282 = sand.u32 %s135, 1
          %s2283 = scalar_lea.sflag [#allocation5], %s2282
          %s2284 = sand.u32 %s135, 1
          %s2285 = smul.addr %s2284, 512
          %s2286 = scalar_lea.vmem [#allocation9], %s2285
          %2288 = dma.done %s2283, 8192
        $region64: #{tpu_custom_call.1} parent=59 // pred_fallthru
          _
      $region60: #{tpu_custom_call.1} parent=5 // pred_fallthru
        _
    $region6: #{tpu_custom_call.1} parent=1 // loop_footer
      %s22 = sadd.s32 1, %s18
    $region7: #{tpu_custom_call.1} parent=1 // loop_footer_branch
      %17 = sbr.rel target = $region3
    $region8: #{tpu_custom_call.1} parent=1 // loop_exit
      _
    %2289 = vsyncpa [#allocation4], 1
    %s2290 = scalar_lea.sflag [#allocation4], 1
    %2291 = vsyncpa %s2290, 1
    %2292 = vsyncpa [#allocation7], 1
    %s2293 = scalar_lea.sflag [#allocation7], 1
    %2294 = vsyncpa %s2293, 1
    %2295 = vsyncpa [#allocation5], 1
    %s2296 = scalar_lea.sflag [#allocation5], 1
    %2297 = vsyncpa %s2296, 1

</llo_original>
